<compile_context>
chip_gen: v7x
topology: tpu7x:2x2x1
jax: 0.10.0
libtpu: 0.0.40
codegen_flags: <defaults>
</compile_context>

<pallas_src>
import functools

import jax
import jax.numpy as jnp
from jax.experimental import pallas as pl
from jax.experimental.pallas import tpu as pltpu


def _round_up(v, m):
    return (v + m - 1) // m * m


def _dir_sums(x, xe, halo, pad, rmask, lmask):
    """Directional window sums for one (th, Wp) channel tile.

    x    : (th, Wp) tile rows.
    xe   : (th + 2*halo, Wp) tile with `halo` extra rows above and below,
           already zeroed wherever they fall outside the image; halo >= pad.
    rmask/lmask : hoisted per-|shift| lane masks (index t in 1..pad).
    Returns (horizontal, vertical, diag "\\", anti-diag "/"), each (th, Wp).
    """
    th, Wp = x.shape

    def hshift(v, t):
        # result[:, w] = v[:, w + t], zero where w + t falls outside [0, Wp).
        if t == 0:
            return v
        rolled = pltpu.roll(v, shift=(-t) % Wp, axis=1)     # XLU lane rotate
        mask = rmask[t] if t > 0 else lmask[-t]
        return jnp.where(mask, rolled, 0.0)

    def vshift(s):
        # result[h, :] = image row (tile_start + h + s), zeros outside image.
        return xe[halo + s:halo + s + th, :]

    h_acc, v_acc, d_acc, a_acc = x, x, x, x                 # s = 0 terms
    for m in range(1, pad + 1):
        for s in (m, -m):
            h_acc = h_acc + hshift(x, s)
            vs = vshift(s)            # shared by vertical / diag / anti-diag
            v_acc = v_acc + vs
            d_acc = d_acc + hshift(vs, s)
            a_acc = a_acc + hshift(vs, -s)
    return h_acc, v_acc, d_acc, a_acc


def _point2dir_halo_kernel(prev_ref, curr_ref, next_ref, out_ref, *,
                           pad, hb, cb, out_dtype):
    """One (Cb, th, Wp) row/channel block with hb-row halos from neighbours."""
    i = pl.program_id(2)
    n_ht = pl.num_programs(2)
    th, Wp = curr_ref.shape[2], curr_ref.shape[3]

    # Hoisted horizontal edge masks, shared by all directions and channels.
    col = jax.lax.broadcasted_iota(jnp.int32, (th, Wp), 1)
    rmask = [None] + [col < (Wp - t) for t in range(1, pad + 1)]
    lmask = [None] + [col >= t for t in range(1, pad + 1)]

    has_above = i > 0
    has_below = i < n_ht - 1

    for cc in range(cb):
        x = curr_ref[0, cc, :, :]                              # (th, Wp)
        # Halo rows: zeroed where they fall outside the image (zero padding).
        pv = jnp.where(has_above, prev_ref[0, cc, :, :], 0.0)  # (hb, Wp)
        nx = jnp.where(has_below, next_ref[0, cc, :, :], 0.0)  # (hb, Wp)
        xe = jnp.concatenate([pv, x, nx], axis=0)              # (th+2hb, Wp)
        h, v, d, a = _dir_sums(x, xe, hb, pad, rmask, lmask)
        out_ref[0, 0, cc, :, :] = h.astype(out_dtype)
        out_ref[0, 1, cc, :, :] = v.astype(out_dtype)
        out_ref[0, 2, cc, :, :] = d.astype(out_dtype)
        out_ref[0, 3, cc, :, :] = a.astype(out_dtype)


def _point2dir_full_kernel(curr_ref, out_ref, *, pad, cb, out_dtype):
    """Full-height (Cb, Hp, Wp) block: no halo inputs, in-kernel zero rows."""
    th, Wp = curr_ref.shape[2], curr_ref.shape[3]

    col = jax.lax.broadcasted_iota(jnp.int32, (th, Wp), 1)
    rmask = [None] + [col < (Wp - t) for t in range(1, pad + 1)]
    lmask = [None] + [col >= t for t in range(1, pad + 1)]

    # Sublane-aligned zero halo (multiple of 8 rows), hoisted out of the loop.
    hz = _round_up(max(pad, 1), 8)
    zrows = jnp.zeros((hz, Wp), curr_ref.dtype) if pad > 0 else None

    for cc in range(cb):
        x = curr_ref[0, cc, :, :]                              # (th, Wp)
        xe = x if pad == 0 else jnp.concatenate([zrows, x, zrows], axis=0)
        halo = 0 if pad == 0 else hz
        h, v, d, a = _dir_sums(x, xe, halo, pad, rmask, lmask)
        out_ref[0, 0, cc, :, :] = h.astype(out_dtype)
        out_ref[0, 1, cc, :, :] = v.astype(out_dtype)
        out_ref[0, 2, cc, :, :] = d.astype(out_dtype)
        out_ref[0, 3, cc, :, :] = a.astype(out_dtype)


def _choose_h_tile(Hp, Wp, target_bytes, itemsize):
    """Largest multiple-of-8 divisor of Hp whose (th, Wp) tile fits target."""
    if Hp * Wp * itemsize <= target_bytes:
        return Hp
    best = 8
    limit_rows = max(target_bytes // (Wp * itemsize), 8)
    d = 8
    while d <= limit_rows:
        if Hp % d == 0:
            best = d
        d += 8
    return best


def _choose_c_block(C, tile_bytes, target_bytes, cap):
    """Largest divisor of C (<= cap) keeping Cb * tile_bytes under target."""
    best = 1
    for cb in range(1, min(C, cap) + 1):
        if C % cb == 0 and cb * tile_bytes <= target_bytes:
            best = cb
    return best


def point2dir_sum(x, win_length, *, target_block_bytes=512 * 1024,
                  max_channel_block=32, out_dtype=None):
    """Pallas implementation of Point2DirSum.forward.

    Args:
      x: (N, C, H, W) float32, NCHW.
      win_length: odd window length (per-direction kernel size).
      target_block_bytes: input-block budget per grid step (~0.5 MiB is safe on
        v5e's 16 MiB scoped-VMEM default; raise to ~1-2 MiB on v6e/v7x).
      max_channel_block: cap on channels folded into one grid step.
      out_dtype: output dtype (default: x.dtype).  bf16 halves the dominant
        output HBM traffic if the consumer tolerates it.
    Returns:
      (N, 4*C, H, W): [horizontal, vertical, diag, anti-diag] window sums.
    """
    assert win_length % 2 == 1, "win_length must be odd for 'same'-sized output"
    N, C, H, W = x.shape
    pad = (win_length - 1) // 2
    out_dtype = x.dtype if out_dtype is None else jnp.dtype(out_dtype)
    itemsize = jnp.dtype(x.dtype).itemsize

    # Lane-dense layout: zero-pad W to a multiple of 128 (== the 'same' zero
    # padding, cropped at the end) so out stores are unmasked full-lane vst;
    # pad H to a multiple of 8 so row tiling is always sublane aligned.
    Wp = _round_up(W, 128)
    Hp = _round_up(H, 8)
    if (Hp, Wp) != (H, W):
        x = jnp.pad(x, ((0, 0), (0, 0), (0, Hp - H), (0, Wp - W)))

    hb = 8                          # halo rows fetched from neighbouring tiles
    if pad <= hb:
        th = _choose_h_tile(Hp, Wp, target_block_bytes, itemsize)
    else:
        # TODO(synk): multi-row halos (hb = round_up(pad, 8)) or a prefix-sum
        # formulation for very large windows on tall images.
        th = Hp
    n_ht = Hp // th
    use_halo = n_ht > 1

    tile_bytes = th * Wp * itemsize
    cb = _choose_c_block(C, tile_bytes, target_block_bytes, max_channel_block)
    grid = (N, C // cb, n_ht)

    curr_spec = pl.BlockSpec((1, cb, th, Wp), lambda n, c, i: (n, c, i, 0))
    out_spec = pl.BlockSpec((1, 4, cb, th, Wp), lambda n, c, i: (n, 0, c, i, 0))

    if use_halo:
        r8 = th // hb               # hb-row blocks per row tile
        nhb = Hp // hb              # hb-row blocks in the (padded) image
        prev_spec = pl.BlockSpec(
            (1, cb, hb, Wp),
            lambda n, c, i: (n, c, jnp.maximum(i * r8 - 1, 0), 0))
        next_spec = pl.BlockSpec(
            (1, cb, hb, Wp),
            lambda n, c, i: (n, c, jnp.minimum(i * r8 + r8, nhb - 1), 0))
        in_specs = [prev_spec, curr_spec, next_spec]
        inputs = (x, x, x)
        kernel = functools.partial(_point2dir_halo_kernel, pad=pad, hb=hb,
                                   cb=cb, out_dtype=out_dtype)
    else:
        in_specs = [curr_spec]
        inputs = (x,)
        kernel = functools.partial(_point2dir_full_kernel, pad=pad, cb=cb,
                                   out_dtype=out_dtype)

    out5 = pl.pallas_call(
        kernel,
        out_shape=jax.ShapeDtypeStruct((N, 4, C, Hp, Wp), out_dtype),
        grid_spec=pltpu.PrefetchScalarGridSpec(
            num_scalar_prefetch=0,
            grid=grid,
            in_specs=in_specs,
            out_specs=out_spec,
        ),
        compiler_params=pltpu.CompilerParams(
            # No carried state across any grid axis (halos come from separate
            # input specs; every output block is written exactly once), so all
            # axes are "parallel" and v7x's two TensorCores can split any axis.
            dimension_semantics=("parallel", "parallel", "parallel"),
            vmem_limit_bytes=32 * 1024 * 1024),
    )(*inputs)

    # (N, 4, C, Hp, Wp) -> (N, 4C, Hp, Wp): free row-major merge; channel order
    # is [horizontal, vertical, diag, anti-diag] x C, matching the PyTorch cat.
    out = out5.reshape(N, 4 * C, Hp, Wp)
    if (Hp, Wp) != (H, W):
        out = out[:, :, :H, :W]
    return out


def _reference_conv(x, win_length):
    """Pure-JAX reference using explicit 2D convs with the diag-embedded
    kernels (mirrors the PyTorch sum_kernel construction)."""
    N, C, H, W = x.shape
    K = win_length
    pad = (K - 1) // 2

    def conv(w):
        return jax.lax.conv_general_dilated(
            x, w, window_strides=(1, 1), padding=((pad, pad), (pad, pad)),
            dimension_numbers=("NCHW", "OIHW", "NCHW"),
            precision=jax.lax.Precision.HIGHEST)

    eye = jnp.eye(C, dtype=x.dtype)
    w_h = jnp.zeros((C, C, K, K), x.dtype).at[:, :, pad, :].set(eye[:, :, None])
    w_v = jnp.zeros((C, C, K, K), x.dtype).at[:, :, :, pad].set(eye[:, :, None])
    w_d = jnp.zeros((C, C, K, K), x.dtype)
    w_a = jnp.zeros((C, C, K, K), x.dtype)
    for d in range(K):
        w_d = w_d.at[:, :, d, d].set(eye)
        w_a = w_a.at[:, :, d, K - 1 - d].set(eye)

    return jnp.concatenate([conv(w_h), conv(w_v), conv(w_d), conv(w_a)], axis=1)


if __name__ == "__main__":
    # Board-game sized example.  The module's only "parameter" (sum_kernel) is
    # deterministic by construction (diag-embedded ones): no weight init needed.
    N, C, H, W = 2, 4, 16, 16
    win_length = 5

    key = jax.random.PRNGKey(0)
    x = jax.random.normal(key, (N, C, H, W), dtype=jnp.float32)

    out = jax.block_until_ready(point2dir_sum(x, win_length))
    assert out.shape == (N, 4 * C, H, W), out.shape
    ref = _reference_conv(x, win_length)
    assert jnp.allclose(out, ref, atol=1e-5, rtol=1e-5), "mismatch vs conv reference"

    # Row-tiled halo path (forced small row tiles on a taller board).
    x2 = jax.random.normal(jax.random.PRNGKey(1), (1, 2, 32, 16), dtype=jnp.float32)
    out2 = jax.block_until_ready(
        point2dir_sum(x2, win_length, target_block_bytes=4096))
    ref2 = _reference_conv(x2, win_length)
    assert jnp.allclose(out2, ref2, atol=1e-5, rtol=1e-5), "mismatch (halo path)"

    # Lane-aligned width + channel blocking + a larger window.
    x3 = jax.random.normal(jax.random.PRNGKey(2), (1, 2, 16, 128), dtype=jnp.float32)
    out3 = jax.block_until_ready(point2dir_sum(x3, 7))
    ref3 = _reference_conv(x3, 7)
    assert jnp.allclose(out3, ref3, atol=1e-5, rtol=1e-5), "mismatch (W=128 path)"

    print("KERNEL_OK")
</pallas_src>

<mosaic_0001>
module attributes {stable_mosaic.version = 11 : i64} {
  func.func @_point2dir_full_kernel(%arg0: i32, %arg1: i32, %arg2: i32, %arg3: memref<1x4x16x128xf32, #tpu.memory_space<vmem>>, %arg4: memref<1x4x4x16x128xf32, #tpu.memory_space<vmem>>) attributes {dimension_semantics = [#tpu.dimension_semantics<parallel>, #tpu.dimension_semantics<parallel>, #tpu.dimension_semantics<parallel>], iteration_bounds = array<i64: 2, 1, 1>, scalar_prefetch = 0 : i64, scratch_operands = 0 : i64, tpu.core_type = #tpu.core_type<tc>, window_params = [{transform_indices = @transform_0, window_bounds = array<i64: 1, 4, 16, 128>}, {transform_indices = @transform_1, window_bounds = array<i64: 1, 4, 4, 16, 128>}]} {
    %0 = tpu.iota {dimensions = array<i32: 1>} : vector<16x128xi32>
    %c127_i32 = arith.constant 127 : i32
    %1 = vector.broadcast %c127_i32 : i32 to vector<16x128xi32>
    %2 = arith.cmpi slt, %0, %1 : vector<16x128xi32>
    %c126_i32 = arith.constant 126 : i32
    %3 = vector.broadcast %c126_i32 : i32 to vector<16x128xi32>
    %4 = arith.cmpi slt, %0, %3 : vector<16x128xi32>
    %c1_i32 = arith.constant 1 : i32
    %5 = vector.broadcast %c1_i32 : i32 to vector<16x128xi32>
    %6 = arith.cmpi sge, %0, %5 : vector<16x128xi32>
    %c2_i32 = arith.constant 2 : i32
    %7 = vector.broadcast %c2_i32 : i32 to vector<16x128xi32>
    %8 = arith.cmpi sge, %0, %7 : vector<16x128xi32>
    %cst = arith.constant 0.000000e+00 : f32
    %9 = vector.broadcast %cst : f32 to vector<8x128xf32>
    %c0 = arith.constant 0 : index
    %c0_0 = arith.constant 0 : index
    %c0_1 = arith.constant 0 : index
    %c0_2 = arith.constant 0 : index
    %10 = vector.load %arg3[%c0, %c0_0, %c0_1, %c0_2] : memref<1x4x16x128xf32, #tpu.memory_space<vmem>>, vector<1x1x16x128xf32>
    %11 = vector.shape_cast %10 : vector<1x1x16x128xf32> to vector<16x128xf32>
    %12 = tpu.concatenate %9, %11, %9 in 0 : vector<8x128xf32>, vector<16x128xf32>, vector<8x128xf32> -> vector<32x128xf32>
    %c127_i32_3 = arith.constant 127 : i32
    %13 = tpu.dynamic_rotate %11 by %c127_i32_3 dim 1 : vector<16x128xf32>, i32 -> vector<16x128xf32>
    %cst_4 = arith.constant 0.000000e+00 : f32
    %14 = vector.broadcast %cst_4 : f32 to vector<16x128xf32>
    %15 = arith.select %2, %13, %14 : vector<16x128xi1>, vector<16x128xf32>
    %16 = arith.addf %11, %15 : vector<16x128xf32>
    %17 = vector.extract_strided_slice %12 {offsets = [9, 0], sizes = [16, 128], strides = [1, 1]} : vector<32x128xf32> to vector<16x128xf32>
    %18 = arith.addf %11, %17 : vector<16x128xf32>
    %c127_i32_5 = arith.constant 127 : i32
    %19 = tpu.dynamic_rotate %17 by %c127_i32_5 dim 1 : vector<16x128xf32>, i32 -> vector<16x128xf32>
    %cst_6 = arith.constant 0.000000e+00 : f32
    %20 = vector.broadcast %cst_6 : f32 to vector<16x128xf32>
    %21 = arith.select %2, %19, %20 : vector<16x128xi1>, vector<16x128xf32>
    %22 = arith.addf %11, %21 : vector<16x128xf32>
    %c1_i32_7 = arith.constant 1 : i32
    %23 = tpu.dynamic_rotate %17 by %c1_i32_7 dim 1 : vector<16x128xf32>, i32 -> vector<16x128xf32>
    %cst_8 = arith.constant 0.000000e+00 : f32
    %24 = vector.broadcast %cst_8 : f32 to vector<16x128xf32>
    %25 = arith.select %6, %23, %24 : vector<16x128xi1>, vector<16x128xf32>
    %26 = arith.addf %11, %25 : vector<16x128xf32>
    %c1_i32_9 = arith.constant 1 : i32
    %27 = tpu.dynamic_rotate %11 by %c1_i32_9 dim 1 : vector<16x128xf32>, i32 -> vector<16x128xf32>
    %cst_10 = arith.constant 0.000000e+00 : f32
    %28 = vector.broadcast %cst_10 : f32 to vector<16x128xf32>
    %29 = arith.select %6, %27, %28 : vector<16x128xi1>, vector<16x128xf32>
    %30 = arith.addf %16, %29 : vector<16x128xf32>
    %31 = vector.extract_strided_slice %12 {offsets = [7, 0], sizes = [16, 128], strides = [1, 1]} : vector<32x128xf32> to vector<16x128xf32>
    %32 = arith.addf %18, %31 : vector<16x128xf32>
    %c1_i32_11 = arith.constant 1 : i32
    %33 = tpu.dynamic_rotate %31 by %c1_i32_11 dim 1 : vector<16x128xf32>, i32 -> vector<16x128xf32>
    %cst_12 = arith.constant 0.000000e+00 : f32
    %34 = vector.broadcast %cst_12 : f32 to vector<16x128xf32>
    %35 = arith.select %6, %33, %34 : vector<16x128xi1>, vector<16x128xf32>
    %36 = arith.addf %22, %35 : vector<16x128xf32>
    %c127_i32_13 = arith.constant 127 : i32
    %37 = tpu.dynamic_rotate %31 by %c127_i32_13 dim 1 : vector<16x128xf32>, i32 -> vector<16x128xf32>
    %cst_14 = arith.constant 0.000000e+00 : f32
    %38 = vector.broadcast %cst_14 : f32 to vector<16x128xf32>
    %39 = arith.select %2, %37, %38 : vector<16x128xi1>, vector<16x128xf32>
    %40 = arith.addf %26, %39 : vector<16x128xf32>
    %c126_i32_15 = arith.constant 126 : i32
    %41 = tpu.dynamic_rotate %11 by %c126_i32_15 dim 1 : vector<16x128xf32>, i32 -> vector<16x128xf32>
    %cst_16 = arith.constant 0.000000e+00 : f32
    %42 = vector.broadcast %cst_16 : f32 to vector<16x128xf32>
    %43 = arith.select %4, %41, %42 : vector<16x128xi1>, vector<16x128xf32>
    %44 = arith.addf %30, %43 : vector<16x128xf32>
    %45 = vector.extract_strided_slice %12 {offsets = [10, 0], sizes = [16, 128], strides = [1, 1]} : vector<32x128xf32> to vector<16x128xf32>
    %46 = arith.addf %32, %45 : vector<16x128xf32>
    %c126_i32_17 = arith.constant 126 : i32
    %47 = tpu.dynamic_rotate %45 by %c126_i32_17 dim 1 : vector<16x128xf32>, i32 -> vector<16x128xf32>
    %cst_18 = arith.constant 0.000000e+00 : f32
    %48 = vector.broadcast %cst_18 : f32 to vector<16x128xf32>
    %49 = arith.select %4, %47, %48 : vector<16x128xi1>, vector<16x128xf32>
    %50 = arith.addf %36, %49 : vector<16x128xf32>
    %c2_i32_19 = arith.constant 2 : i32
    %51 = tpu.dynamic_rotate %45 by %c2_i32_19 dim 1 : vector<16x128xf32>, i32 -> vector<16x128xf32>
    %cst_20 = arith.constant 0.000000e+00 : f32
    %52 = vector.broadcast %cst_20 : f32 to vector<16x128xf32>
    %53 = arith.select %8, %51, %52 : vector<16x128xi1>, vector<16x128xf32>
    %54 = arith.addf %40, %53 : vector<16x128xf32>
    %c2_i32_21 = arith.constant 2 : i32
    %55 = tpu.dynamic_rotate %11 by %c2_i32_21 dim 1 : vector<16x128xf32>, i32 -> vector<16x128xf32>
    %cst_22 = arith.constant 0.000000e+00 : f32
    %56 = vector.broadcast %cst_22 : f32 to vector<16x128xf32>
    %57 = arith.select %8, %55, %56 : vector<16x128xi1>, vector<16x128xf32>
    %58 = arith.addf %44, %57 : vector<16x128xf32>
    %59 = vector.extract_strided_slice %12 {offsets = [6, 0], sizes = [16, 128], strides = [1, 1]} : vector<32x128xf32> to vector<16x128xf32>
    %60 = arith.addf %46, %59 : vector<16x128xf32>
    %c2_i32_23 = arith.constant 2 : i32
    %61 = tpu.dynamic_rotate %59 by %c2_i32_23 dim 1 : vector<16x128xf32>, i32 -> vector<16x128xf32>
    %cst_24 = arith.constant 0.000000e+00 : f32
    %62 = vector.broadcast %cst_24 : f32 to vector<16x128xf32>
    %63 = arith.select %8, %61, %62 : vector<16x128xi1>, vector<16x128xf32>
    %64 = arith.addf %50, %63 : vector<16x128xf32>
    %c126_i32_25 = arith.constant 126 : i32
    %65 = tpu.dynamic_rotate %59 by %c126_i32_25 dim 1 : vector<16x128xf32>, i32 -> vector<16x128xf32>
    %cst_26 = arith.constant 0.000000e+00 : f32
    %66 = vector.broadcast %cst_26 : f32 to vector<16x128xf32>
    %67 = arith.select %4, %65, %66 : vector<16x128xi1>, vector<16x128xf32>
    %68 = arith.addf %54, %67 : vector<16x128xf32>
    %c0_27 = arith.constant 0 : index
    %c0_28 = arith.constant 0 : index
    %c0_29 = arith.constant 0 : index
    %c0_30 = arith.constant 0 : index
    %c0_31 = arith.constant 0 : index
    %69 = vector.load %arg4[%c0_27, %c0_28, %c0_29, %c0_30, %c0_31] : memref<1x4x4x16x128xf32, #tpu.memory_space<vmem>>, vector<1x1x1x16x128xf32>
    %70 = vector.shape_cast %69 : vector<1x1x1x16x128xf32> to vector<16x128xf32>
    %71 = vector.shape_cast %58 : vector<16x128xf32> to vector<1x1x1x16x128xf32>
    tpu.vector_store %arg4[%c0_27, %c0_28, %c0_29, %c0_30, %c0_31], %71 {strides = array<i32>} : memref<1x4x4x16x128xf32, #tpu.memory_space<vmem>>, vector<1x1x1x16x128xf32>,
    %c0_32 = arith.constant 0 : index
    %c1 = arith.constant 1 : index
    %c0_33 = arith.constant 0 : index
    %c0_34 = arith.constant 0 : index
    %c0_35 = arith.constant 0 : index
    %72 = vector.load %arg4[%c0_32, %c1, %c0_33, %c0_34, %c0_35] : memref<1x4x4x16x128xf32, #tpu.memory_space<vmem>>, vector<1x1x1x16x128xf32>
    %73 = vector.shape_cast %72 : vector<1x1x1x16x128xf32> to vector<16x128xf32>
    %74 = vector.shape_cast %60 : vector<16x128xf32> to vector<1x1x1x16x128xf32>
    tpu.vector_store %arg4[%c0_32, %c1, %c0_33, %c0_34, %c0_35], %74 {strides = array<i32>} : memref<1x4x4x16x128xf32, #tpu.memory_space<vmem>>, vector<1x1x1x16x128xf32>,
    %c0_36 = arith.constant 0 : index
    %c2 = arith.constant 2 : index
    %c0_37 = arith.constant 0 : index
    %c0_38 = arith.constant 0 : index
    %c0_39 = arith.constant 0 : index
    %75 = vector.load %arg4[%c0_36, %c2, %c0_37, %c0_38, %c0_39] : memref<1x4x4x16x128xf32, #tpu.memory_space<vmem>>, vector<1x1x1x16x128xf32>
    %76 = vector.shape_cast %75 : vector<1x1x1x16x128xf32> to vector<16x128xf32>
    %77 = vector.shape_cast %64 : vector<16x128xf32> to vector<1x1x1x16x128xf32>
    tpu.vector_store %arg4[%c0_36, %c2, %c0_37, %c0_38, %c0_39], %77 {strides = array<i32>} : memref<1x4x4x16x128xf32, #tpu.memory_space<vmem>>, vector<1x1x1x16x128xf32>,
    %c0_40 = arith.constant 0 : index
    %c3 = arith.constant 3 : index
    %c0_41 = arith.constant 0 : index
    %c0_42 = arith.constant 0 : index
    %c0_43 = arith.constant 0 : index
    %78 = vector.load %arg4[%c0_40, %c3, %c0_41, %c0_42, %c0_43] : memref<1x4x4x16x128xf32, #tpu.memory_space<vmem>>, vector<1x1x1x16x128xf32>
    %79 = vector.shape_cast %78 : vector<1x1x1x16x128xf32> to vector<16x128xf32>
    %80 = vector.shape_cast %68 : vector<16x128xf32> to vector<1x1x1x16x128xf32>
    tpu.vector_store %arg4[%c0_40, %c3, %c0_41, %c0_42, %c0_43], %80 {strides = array<i32>} : memref<1x4x4x16x128xf32, #tpu.memory_space<vmem>>, vector<1x1x1x16x128xf32>,
    %c0_44 = arith.constant 0 : index
    %c1_45 = arith.constant 1 : index
    %c0_46 = arith.constant 0 : index
    %c0_47 = arith.constant 0 : index
    %81 = vector.load %arg3[%c0_44, %c1_45, %c0_46, %c0_47] : memref<1x4x16x128xf32, #tpu.memory_space<vmem>>, vector<1x1x16x128xf32>
    %82 = vector.shape_cast %81 : vector<1x1x16x128xf32> to vector<16x128xf32>
    %83 = tpu.concatenate %9, %82, %9 in 0 : vector<8x128xf32>, vector<16x128xf32>, vector<8x128xf32> -> vector<32x128xf32>
    %c127_i32_48 = arith.constant 127 : i32
    %84 = tpu.dynamic_rotate %82 by %c127_i32_48 dim 1 : vector<16x128xf32>, i32 -> vector<16x128xf32>
    %cst_49 = arith.constant 0.000000e+00 : f32
    %85 = vector.broadcast %cst_49 : f32 to vector<16x128xf32>
    %86 = arith.select %2, %84, %85 : vector<16x128xi1>, vector<16x128xf32>
    %87 = arith.addf %82, %86 : vector<16x128xf32>
    %88 = vector.extract_strided_slice %83 {offsets = [9, 0], sizes = [16, 128], strides = [1, 1]} : vector<32x128xf32> to vector<16x128xf32>
    %89 = arith.addf %82, %88 : vector<16x128xf32>
    %c127_i32_50 = arith.constant 127 : i32
    %90 = tpu.dynamic_rotate %88 by %c127_i32_50 dim 1 : vector<16x128xf32>, i32 -> vector<16x128xf32>
    %cst_51 = arith.constant 0.000000e+00 : f32
    %91 = vector.broadcast %cst_51 : f32 to vector<16x128xf32>
    %92 = arith.select %2, %90, %91 : vector<16x128xi1>, vector<16x128xf32>
    %93 = arith.addf %82, %92 : vector<16x128xf32>
    %c1_i32_52 = arith.constant 1 : i32
    %94 = tpu.dynamic_rotate %88 by %c1_i32_52 dim 1 : vector<16x128xf32>, i32 -> vector<16x128xf32>
    %cst_53 = arith.constant 0.000000e+00 : f32
    %95 = vector.broadcast %cst_53 : f32 to vector<16x128xf32>
    %96 = arith.select %6, %94, %95 : vector<16x128xi1>, vector<16x128xf32>
    %97 = arith.addf %82, %96 : vector<16x128xf32>
    %c1_i32_54 = arith.constant 1 : i32
    %98 = tpu.dynamic_rotate %82 by %c1_i32_54 dim 1 : vector<16x128xf32>, i32 -> vector<16x128xf32>
    %cst_55 = arith.constant 0.000000e+00 : f32
    %99 = vector.broadcast %cst_55 : f32 to vector<16x128xf32>
    %100 = arith.select %6, %98, %99 : vector<16x128xi1>, vector<16x128xf32>
    %101 = arith.addf %87, %100 : vector<16x128xf32>
    %102 = vector.extract_strided_slice %83 {offsets = [7, 0], sizes = [16, 128], strides = [1, 1]} : vector<32x128xf32> to vector<16x128xf32>
    %103 = arith.addf %89, %102 : vector<16x128xf32>
    %c1_i32_56 = arith.constant 1 : i32
    %104 = tpu.dynamic_rotate %102 by %c1_i32_56 dim 1 : vector<16x128xf32>, i32 -> vector<16x128xf32>
    %cst_57 = arith.constant 0.000000e+00 : f32
    %105 = vector.broadcast %cst_57 : f32 to vector<16x128xf32>
    %106 = arith.select %6, %104, %105 : vector<16x128xi1>, vector<16x128xf32>
    %107 = arith.addf %93, %106 : vector<16x128xf32>
    %c127_i32_58 = arith.constant 127 : i32
    %108 = tpu.dynamic_rotate %102 by %c127_i32_58 dim 1 : vector<16x128xf32>, i32 -> vector<16x128xf32>
    %cst_59 = arith.constant 0.000000e+00 : f32
    %109 = vector.broadcast %cst_59 : f32 to vector<16x128xf32>
    %110 = arith.select %2, %108, %109 : vector<16x128xi1>, vector<16x128xf32>
    %111 = arith.addf %97, %110 : vector<16x128xf32>
    %c126_i32_60 = arith.constant 126 : i32
    %112 = tpu.dynamic_rotate %82 by %c126_i32_60 dim 1 : vector<16x128xf32>, i32 -> vector<16x128xf32>
    %cst_61 = arith.constant 0.000000e+00 : f32
    %113 = vector.broadcast %cst_61 : f32 to vector<16x128xf32>
    %114 = arith.select %4, %112, %113 : vector<16x128xi1>, vector<16x128xf32>
    %115 = arith.addf %101, %114 : vector<16x128xf32>
    %116 = vector.extract_strided_slice %83 {offsets = [10, 0], sizes = [16, 128], strides = [1, 1]} : vector<32x128xf32> to vector<16x128xf32>
    %117 = arith.addf %103, %116 : vector<16x128xf32>
    %c126_i32_62 = arith.constant 126 : i32
    %118 = tpu.dynamic_rotate %116 by %c126_i32_62 dim 1 : vector<16x128xf32>, i32 -> vector<16x128xf32>
    %cst_63 = arith.constant 0.000000e+00 : f32
    %119 = vector.broadcast %cst_63 : f32 to vector<16x128xf32>
    %120 = arith.select %4, %118, %119 : vector<16x128xi1>, vector<16x128xf32>
    %121 = arith.addf %107, %120 : vector<16x128xf32>
    %c2_i32_64 = arith.constant 2 : i32
    %122 = tpu.dynamic_rotate %116 by %c2_i32_64 dim 1 : vector<16x128xf32>, i32 -> vector<16x128xf32>
    %cst_65 = arith.constant 0.000000e+00 : f32
    %123 = vector.broadcast %cst_65 : f32 to vector<16x128xf32>
    %124 = arith.select %8, %122, %123 : vector<16x128xi1>, vector<16x128xf32>
    %125 = arith.addf %111, %124 : vector<16x128xf32>
    %c2_i32_66 = arith.constant 2 : i32
    %126 = tpu.dynamic_rotate %82 by %c2_i32_66 dim 1 : vector<16x128xf32>, i32 -> vector<16x128xf32>
    %cst_67 = arith.constant 0.000000e+00 : f32
    %127 = vector.broadcast %cst_67 : f32 to vector<16x128xf32>
    %128 = arith.select %8, %126, %127 : vector<16x128xi1>, vector<16x128xf32>
    %129 = arith.addf %115, %128 : vector<16x128xf32>
    %130 = vector.extract_strided_slice %83 {offsets = [6, 0], sizes = [16, 128], strides = [1, 1]} : vector<32x128xf32> to vector<16x128xf32>
    %131 = arith.addf %117, %130 : vector<16x128xf32>
    %c2_i32_68 = arith.constant 2 : i32
    %132 = tpu.dynamic_rotate %130 by %c2_i32_68 dim 1 : vector<16x128xf32>, i32 -> vector<16x128xf32>
    %cst_69 = arith.constant 0.000000e+00 : f32
    %133 = vector.broadcast %cst_69 : f32 to vector<16x128xf32>
    %134 = arith.select %8, %132, %133 : vector<16x128xi1>, vector<16x128xf32>
    %135 = arith.addf %121, %134 : vector<16x128xf32>
    %c126_i32_70 = arith.constant 126 : i32
    %136 = tpu.dynamic_rotate %130 by %c126_i32_70 dim 1 : vector<16x128xf32>, i32 -> vector<16x128xf32>
    %cst_71 = arith.constant 0.000000e+00 : f32
    %137 = vector.broadcast %cst_71 : f32 to vector<16x128xf32>
    %138 = arith.select %4, %136, %137 : vector<16x128xi1>, vector<16x128xf32>
    %139 = arith.addf %125, %138 : vector<16x128xf32>
    %c0_72 = arith.constant 0 : index
    %c0_73 = arith.constant 0 : index
    %c1_74 = arith.constant 1 : index
    %c0_75 = arith.constant 0 : index
    %c0_76 = arith.constant 0 : index
    %140 = vector.load %arg4[%c0_72, %c0_73, %c1_74, %c0_75, %c0_76] : memref<1x4x4x16x128xf32, #tpu.memory_space<vmem>>, vector<1x1x1x16x128xf32>
    %141 = vector.shape_cast %140 : vector<1x1x1x16x128xf32> to vector<16x128xf32>
    %142 = vector.shape_cast %129 : vector<16x128xf32> to vector<1x1x1x16x128xf32>
    tpu.vector_store %arg4[%c0_72, %c0_73, %c1_74, %c0_75, %c0_76], %142 {strides = array<i32>} : memref<1x4x4x16x128xf32, #tpu.memory_space<vmem>>, vector<1x1x1x16x128xf32>,
    %c0_77 = arith.constant 0 : index
    %c1_78 = arith.constant 1 : index
    %c1_79 = arith.constant 1 : index
    %c0_80 = arith.constant 0 : index
    %c0_81 = arith.constant 0 : index
    %143 = vector.load %arg4[%c0_77, %c1_78, %c1_79, %c0_80, %c0_81] : memref<1x4x4x16x128xf32, #tpu.memory_space<vmem>>, vector<1x1x1x16x128xf32>
    %144 = vector.shape_cast %143 : vector<1x1x1x16x128xf32> to vector<16x128xf32>
    %145 = vector.shape_cast %131 : vector<16x128xf32> to vector<1x1x1x16x128xf32>
    tpu.vector_store %arg4[%c0_77, %c1_78, %c1_79, %c0_80, %c0_81], %145 {strides = array<i32>} : memref<1x4x4x16x128xf32, #tpu.memory_space<vmem>>, vector<1x1x1x16x128xf32>,
    %c0_82 = arith.constant 0 : index
    %c2_83 = arith.constant 2 : index
    %c1_84 = arith.constant 1 : index
    %c0_85 = arith.constant 0 : index
    %c0_86 = arith.constant 0 : index
    %146 = vector.load %arg4[%c0_82, %c2_83, %c1_84, %c0_85, %c0_86] : memref<1x4x4x16x128xf32, #tpu.memory_space<vmem>>, vector<1x1x1x16x128xf32>
    %147 = vector.shape_cast %146 : vector<1x1x1x16x128xf32> to vector<16x128xf32>
    %148 = vector.shape_cast %135 : vector<16x128xf32> to vector<1x1x1x16x128xf32>
    tpu.vector_store %arg4[%c0_82, %c2_83, %c1_84, %c0_85, %c0_86], %148 {strides = array<i32>} : memref<1x4x4x16x128xf32, #tpu.memory_space<vmem>>, vector<1x1x1x16x128xf32>,
    %c0_87 = arith.constant 0 : index
    %c3_88 = arith.constant 3 : index
    %c1_89 = arith.constant 1 : index
    %c0_90 = arith.constant 0 : index
    %c0_91 = arith.constant 0 : index
    %149 = vector.load %arg4[%c0_87, %c3_88, %c1_89, %c0_90, %c0_91] : memref<1x4x4x16x128xf32, #tpu.memory_space<vmem>>, vector<1x1x1x16x128xf32>
    %150 = vector.shape_cast %149 : vector<1x1x1x16x128xf32> to vector<16x128xf32>
    %151 = vector.shape_cast %139 : vector<16x128xf32> to vector<1x1x1x16x128xf32>
    tpu.vector_store %arg4[%c0_87, %c3_88, %c1_89, %c0_90, %c0_91], %151 {strides = array<i32>} : memref<1x4x4x16x128xf32, #tpu.memory_space<vmem>>, vector<1x1x1x16x128xf32>,
    %c0_92 = arith.constant 0 : index
    %c2_93 = arith.constant 2 : index
    %c0_94 = arith.constant 0 : index
    %c0_95 = arith.constant 0 : index
    %152 = vector.load %arg3[%c0_92, %c2_93, %c0_94, %c0_95] : memref<1x4x16x128xf32, #tpu.memory_space<vmem>>, vector<1x1x16x128xf32>
    %153 = vector.shape_cast %152 : vector<1x1x16x128xf32> to vector<16x128xf32>
    %154 = tpu.concatenate %9, %153, %9 in 0 : vector<8x128xf32>, vector<16x128xf32>, vector<8x128xf32> -> vector<32x128xf32>
    %c127_i32_96 = arith.constant 127 : i32
    %155 = tpu.dynamic_rotate %153 by %c127_i32_96 dim 1 : vector<16x128xf32>, i32 -> vector<16x128xf32>
    %cst_97 = arith.constant 0.000000e+00 : f32
    %156 = vector.broadcast %cst_97 : f32 to vector<16x128xf32>
    %157 = arith.select %2, %155, %156 : vector<16x128xi1>, vector<16x128xf32>
    %158 = arith.addf %153, %157 : vector<16x128xf32>
    %159 = vector.extract_strided_slice %154 {offsets = [9, 0], sizes = [16, 128], strides = [1, 1]} : vector<32x128xf32> to vector<16x128xf32>
    %160 = arith.addf %153, %159 : vector<16x128xf32>
    %c127_i32_98 = arith.constant 127 : i32
    %161 = tpu.dynamic_rotate %159 by %c127_i32_98 dim 1 : vector<16x128xf32>, i32 -> vector<16x128xf32>
    %cst_99 = arith.constant 0.000000e+00 : f32
    %162 = vector.broadcast %cst_99 : f32 to vector<16x128xf32>
    %163 = arith.select %2, %161, %162 : vector<16x128xi1>, vector<16x128xf32>
    %164 = arith.addf %153, %163 : vector<16x128xf32>
    %c1_i32_100 = arith.constant 1 : i32
    %165 = tpu.dynamic_rotate %159 by %c1_i32_100 dim 1 : vector<16x128xf32>, i32 -> vector<16x128xf32>
    %cst_101 = arith.constant 0.000000e+00 : f32
    %166 = vector.broadcast %cst_101 : f32 to vector<16x128xf32>
    %167 = arith.select %6, %165, %166 : vector<16x128xi1>, vector<16x128xf32>
    %168 = arith.addf %153, %167 : vector<16x128xf32>
    %c1_i32_102 = arith.constant 1 : i32
    %169 = tpu.dynamic_rotate %153 by %c1_i32_102 dim 1 : vector<16x128xf32>, i32 -> vector<16x128xf32>
    %cst_103 = arith.constant 0.000000e+00 : f32
    %170 = vector.broadcast %cst_103 : f32 to vector<16x128xf32>
    %171 = arith.select %6, %169, %170 : vector<16x128xi1>, vector<16x128xf32>
    %172 = arith.addf %158, %171 : vector<16x128xf32>
    %173 = vector.extract_strided_slice %154 {offsets = [7, 0], sizes = [16, 128], strides = [1, 1]} : vector<32x128xf32> to vector<16x128xf32>
    %174 = arith.addf %160, %173 : vector<16x128xf32>
    %c1_i32_104 = arith.constant 1 : i32
    %175 = tpu.dynamic_rotate %173 by %c1_i32_104 dim 1 : vector<16x128xf32>, i32 -> vector<16x128xf32>
    %cst_105 = arith.constant 0.000000e+00 : f32
    %176 = vector.broadcast %cst_105 : f32 to vector<16x128xf32>
    %177 = arith.select %6, %175, %176 : vector<16x128xi1>, vector<16x128xf32>
    %178 = arith.addf %164, %177 : vector<16x128xf32>
    %c127_i32_106 = arith.constant 127 : i32
    %179 = tpu.dynamic_rotate %173 by %c127_i32_106 dim 1 : vector<16x128xf32>, i32 -> vector<16x128xf32>
    %cst_107 = arith.constant 0.000000e+00 : f32
    %180 = vector.broadcast %cst_107 : f32 to vector<16x128xf32>
    %181 = arith.select %2, %179, %180 : vector<16x128xi1>, vector<16x128xf32>
    %182 = arith.addf %168, %181 : vector<16x128xf32>
    %c126_i32_108 = arith.constant 126 : i32
    %183 = tpu.dynamic_rotate %153 by %c126_i32_108 dim 1 : vector<16x128xf32>, i32 -> vector<16x128xf32>
    %cst_109 = arith.constant 0.000000e+00 : f32
    %184 = vector.broadcast %cst_109 : f32 to vector<16x128xf32>
    %185 = arith.select %4, %183, %184 : vector<16x128xi1>, vector<16x128xf32>
    %186 = arith.addf %172, %185 : vector<16x128xf32>
    %187 = vector.extract_strided_slice %154 {offsets = [10, 0], sizes = [16, 128], strides = [1, 1]} : vector<32x128xf32> to vector<16x128xf32>
    %188 = arith.addf %174, %187 : vector<16x128xf32>
    %c126_i32_110 = arith.constant 126 : i32
    %189 = tpu.dynamic_rotate %187 by %c126_i32_110 dim 1 : vector<16x128xf32>, i32 -> vector<16x128xf32>
    %cst_111 = arith.constant 0.000000e+00 : f32
    %190 = vector.broadcast %cst_111 : f32 to vector<16x128xf32>
    %191 = arith.select %4, %189, %190 : vector<16x128xi1>, vector<16x128xf32>
    %192 = arith.addf %178, %191 : vector<16x128xf32>
    %c2_i32_112 = arith.constant 2 : i32
    %193 = tpu.dynamic_rotate %187 by %c2_i32_112 dim 1 : vector<16x128xf32>, i32 -> vector<16x128xf32>
    %cst_113 = arith.constant 0.000000e+00 : f32
    %194 = vector.broadcast %cst_113 : f32 to vector<16x128xf32>
    %195 = arith.select %8, %193, %194 : vector<16x128xi1>, vector<16x128xf32>
    %196 = arith.addf %182, %195 : vector<16x128xf32>
    %c2_i32_114 = arith.constant 2 : i32
    %197 = tpu.dynamic_rotate %153 by %c2_i32_114 dim 1 : vector<16x128xf32>, i32 -> vector<16x128xf32>
    %cst_115 = arith.constant 0.000000e+00 : f32
    %198 = vector.broadcast %cst_115 : f32 to vector<16x128xf32>
    %199 = arith.select %8, %197, %198 : vector<16x128xi1>, vector<16x128xf32>
    %200 = arith.addf %186, %199 : vector<16x128xf32>
    %201 = vector.extract_strided_slice %154 {offsets = [6, 0], sizes = [16, 128], strides = [1, 1]} : vector<32x128xf32> to vector<16x128xf32>
    %202 = arith.addf %188, %201 : vector<16x128xf32>
    %c2_i32_116 = arith.constant 2 : i32
    %203 = tpu.dynamic_rotate %201 by %c2_i32_116 dim 1 : vector<16x128xf32>, i32 -> vector<16x128xf32>
    %cst_117 = arith.constant 0.000000e+00 : f32
    %204 = vector.broadcast %cst_117 : f32 to vector<16x128xf32>
    %205 = arith.select %8, %203, %204 : vector<16x128xi1>, vector<16x128xf32>
    %206 = arith.addf %192, %205 : vector<16x128xf32>
    %c126_i32_118 = arith.constant 126 : i32
    %207 = tpu.dynamic_rotate %201 by %c126_i32_118 dim 1 : vector<16x128xf32>, i32 -> vector<16x128xf32>
    %cst_119 = arith.constant 0.000000e+00 : f32
    %208 = vector.broadcast %cst_119 : f32 to vector<16x128xf32>
    %209 = arith.select %4, %207, %208 : vector<16x128xi1>, vector<16x128xf32>
    %210 = arith.addf %196, %209 : vector<16x128xf32>
    %c0_120 = arith.constant 0 : index
    %c0_121 = arith.constant 0 : index
    %c2_122 = arith.constant 2 : index
    %c0_123 = arith.constant 0 : index
    %c0_124 = arith.constant 0 : index
    %211 = vector.load %arg4[%c0_120, %c0_121, %c2_122, %c0_123, %c0_124] : memref<1x4x4x16x128xf32, #tpu.memory_space<vmem>>, vector<1x1x1x16x128xf32>
    %212 = vector.shape_cast %211 : vector<1x1x1x16x128xf32> to vector<16x128xf32>
    %213 = vector.shape_cast %200 : vector<16x128xf32> to vector<1x1x1x16x128xf32>
    tpu.vector_store %arg4[%c0_120, %c0_121, %c2_122, %c0_123, %c0_124], %213 {strides = array<i32>} : memref<1x4x4x16x128xf32, #tpu.memory_space<vmem>>, vector<1x1x1x16x128xf32>,
    %c0_125 = arith.constant 0 : index
    %c1_126 = arith.constant 1 : index
    %c2_127 = arith.constant 2 : index
    %c0_128 = arith.constant 0 : index
    %c0_129 = arith.constant 0 : index
    %214 = vector.load %arg4[%c0_125, %c1_126, %c2_127, %c0_128, %c0_129] : memref<1x4x4x16x128xf32, #tpu.memory_space<vmem>>, vector<1x1x1x16x128xf32>
    %215 = vector.shape_cast %214 : vector<1x1x1x16x128xf32> to vector<16x128xf32>
    %216 = vector.shape_cast %202 : vector<16x128xf32> to vector<1x1x1x16x128xf32>
    tpu.vector_store %arg4[%c0_125, %c1_126, %c2_127, %c0_128, %c0_129], %216 {strides = array<i32>} : memref<1x4x4x16x128xf32, #tpu.memory_space<vmem>>, vector<1x1x1x16x128xf32>,
    %c0_130 = arith.constant 0 : index
    %c2_131 = arith.constant 2 : index
    %c2_132 = arith.constant 2 : index
    %c0_133 = arith.constant 0 : index
    %c0_134 = arith.constant 0 : index
    %217 = vector.load %arg4[%c0_130, %c2_131, %c2_132, %c0_133, %c0_134] : memref<1x4x4x16x128xf32, #tpu.memory_space<vmem>>, vector<1x1x1x16x128xf32>
    %218 = vector.shape_cast %217 : vector<1x1x1x16x128xf32> to vector<16x128xf32>
    %219 = vector.shape_cast %206 : vector<16x128xf32> to vector<1x1x1x16x128xf32>
    tpu.vector_store %arg4[%c0_130, %c2_131, %c2_132, %c0_133, %c0_134], %219 {strides = array<i32>} : memref<1x4x4x16x128xf32, #tpu.memory_space<vmem>>, vector<1x1x1x16x128xf32>,
    %c0_135 = arith.constant 0 : index
    %c3_136 = arith.constant 3 : index
    %c2_137 = arith.constant 2 : index
    %c0_138 = arith.constant 0 : index
    %c0_139 = arith.constant 0 : index
    %220 = vector.load %arg4[%c0_135, %c3_136, %c2_137, %c0_138, %c0_139] : memref<1x4x4x16x128xf32, #tpu.memory_space<vmem>>, vector<1x1x1x16x128xf32>
    %221 = vector.shape_cast %220 : vector<1x1x1x16x128xf32> to vector<16x128xf32>
    %222 = vector.shape_cast %210 : vector<16x128xf32> to vector<1x1x1x16x128xf32>
    tpu.vector_store %arg4[%c0_135, %c3_136, %c2_137, %c0_138, %c0_139], %222 {strides = array<i32>} : memref<1x4x4x16x128xf32, #tpu.memory_space<vmem>>, vector<1x1x1x16x128xf32>,
    %c0_140 = arith.constant 0 : index
    %c3_141 = arith.constant 3 : index
    %c0_142 = arith.constant 0 : index
    %c0_143 = arith.constant 0 : index
    %223 = vector.load %arg3[%c0_140, %c3_141, %c0_142, %c0_143] : memref<1x4x16x128xf32, #tpu.memory_space<vmem>>, vector<1x1x16x128xf32>
    %224 = vector.shape_cast %223 : vector<1x1x16x128xf32> to vector<16x128xf32>
    %225 = tpu.concatenate %9, %224, %9 in 0 : vector<8x128xf32>, vector<16x128xf32>, vector<8x128xf32> -> vector<32x128xf32>
    %c127_i32_144 = arith.constant 127 : i32
    %226 = tpu.dynamic_rotate %224 by %c127_i32_144 dim 1 : vector<16x128xf32>, i32 -> vector<16x128xf32>
    %cst_145 = arith.constant 0.000000e+00 : f32
    %227 = vector.broadcast %cst_145 : f32 to vector<16x128xf32>
    %228 = arith.select %2, %226, %227 : vector<16x128xi1>, vector<16x128xf32>
    %229 = arith.addf %224, %228 : vector<16x128xf32>
    %230 = vector.extract_strided_slice %225 {offsets = [9, 0], sizes = [16, 128], strides = [1, 1]} : vector<32x128xf32> to vector<16x128xf32>
    %231 = arith.addf %224, %230 : vector<16x128xf32>
    %c127_i32_146 = arith.constant 127 : i32
    %232 = tpu.dynamic_rotate %230 by %c127_i32_146 dim 1 : vector<16x128xf32>, i32 -> vector<16x128xf32>
    %cst_147 = arith.constant 0.000000e+00 : f32
    %233 = vector.broadcast %cst_147 : f32 to vector<16x128xf32>
    %234 = arith.select %2, %232, %233 : vector<16x128xi1>, vector<16x128xf32>
    %235 = arith.addf %224, %234 : vector<16x128xf32>
    %c1_i32_148 = arith.constant 1 : i32
    %236 = tpu.dynamic_rotate %230 by %c1_i32_148 dim 1 : vector<16x128xf32>, i32 -> vector<16x128xf32>
    %cst_149 = arith.constant 0.000000e+00 : f32
    %237 = vector.broadcast %cst_149 : f32 to vector<16x128xf32>
    %238 = arith.select %6, %236, %237 : vector<16x128xi1>, vector<16x128xf32>
    %239 = arith.addf %224, %238 : vector<16x128xf32>
    %c1_i32_150 = arith.constant 1 : i32
    %240 = tpu.dynamic_rotate %224 by %c1_i32_150 dim 1 : vector<16x128xf32>, i32 -> vector<16x128xf32>
    %cst_151 = arith.constant 0.000000e+00 : f32
    %241 = vector.broadcast %cst_151 : f32 to vector<16x128xf32>
    %242 = arith.select %6, %240, %241 : vector<16x128xi1>, vector<16x128xf32>
    %243 = arith.addf %229, %242 : vector<16x128xf32>
    %244 = vector.extract_strided_slice %225 {offsets = [7, 0], sizes = [16, 128], strides = [1, 1]} : vector<32x128xf32> to vector<16x128xf32>
    %245 = arith.addf %231, %244 : vector<16x128xf32>
    %c1_i32_152 = arith.constant 1 : i32
    %246 = tpu.dynamic_rotate %244 by %c1_i32_152 dim 1 : vector<16x128xf32>, i32 -> vector<16x128xf32>
    %cst_153 = arith.constant 0.000000e+00 : f32
    %247 = vector.broadcast %cst_153 : f32 to vector<16x128xf32>
    %248 = arith.select %6, %246, %247 : vector<16x128xi1>, vector<16x128xf32>
    %249 = arith.addf %235, %248 : vector<16x128xf32>
    %c127_i32_154 = arith.constant 127 : i32
    %250 = tpu.dynamic_rotate %244 by %c127_i32_154 dim 1 : vector<16x128xf32>, i32 -> vector<16x128xf32>
    %cst_155 = arith.constant 0.000000e+00 : f32
    %251 = vector.broadcast %cst_155 : f32 to vector<16x128xf32>
    %252 = arith.select %2, %250, %251 : vector<16x128xi1>, vector<16x128xf32>
    %253 = arith.addf %239, %252 : vector<16x128xf32>
    %c126_i32_156 = arith.constant 126 : i32
    %254 = tpu.dynamic_rotate %224 by %c126_i32_156 dim 1 : vector<16x128xf32>, i32 -> vector<16x128xf32>
    %cst_157 = arith.constant 0.000000e+00 : f32
    %255 = vector.broadcast %cst_157 : f32 to vector<16x128xf32>
    %256 = arith.select %4, %254, %255 : vector<16x128xi1>, vector<16x128xf32>
    %257 = arith.addf %243, %256 : vector<16x128xf32>
    %258 = vector.extract_strided_slice %225 {offsets = [10, 0], sizes = [16, 128], strides = [1, 1]} : vector<32x128xf32> to vector<16x128xf32>
    %259 = arith.addf %245, %258 : vector<16x128xf32>
    %c126_i32_158 = arith.constant 126 : i32
    %260 = tpu.dynamic_rotate %258 by %c126_i32_158 dim 1 : vector<16x128xf32>, i32 -> vector<16x128xf32>
    %cst_159 = arith.constant 0.000000e+00 : f32
    %261 = vector.broadcast %cst_159 : f32 to vector<16x128xf32>
    %262 = arith.select %4, %260, %261 : vector<16x128xi1>, vector<16x128xf32>
    %263 = arith.addf %249, %262 : vector<16x128xf32>
    %c2_i32_160 = arith.constant 2 : i32
    %264 = tpu.dynamic_rotate %258 by %c2_i32_160 dim 1 : vector<16x128xf32>, i32 -> vector<16x128xf32>
    %cst_161 = arith.constant 0.000000e+00 : f32
    %265 = vector.broadcast %cst_161 : f32 to vector<16x128xf32>
    %266 = arith.select %8, %264, %265 : vector<16x128xi1>, vector<16x128xf32>
    %267 = arith.addf %253, %266 : vector<16x128xf32>
    %c2_i32_162 = arith.constant 2 : i32
    %268 = tpu.dynamic_rotate %224 by %c2_i32_162 dim 1 : vector<16x128xf32>, i32 -> vector<16x128xf32>
    %cst_163 = arith.constant 0.000000e+00 : f32
    %269 = vector.broadcast %cst_163 : f32 to vector<16x128xf32>
    %270 = arith.select %8, %268, %269 : vector<16x128xi1>, vector<16x128xf32>
    %271 = arith.addf %257, %270 : vector<16x128xf32>
    %272 = vector.extract_strided_slice %225 {offsets = [6, 0], sizes = [16, 128], strides = [1, 1]} : vector<32x128xf32> to vector<16x128xf32>
    %273 = arith.addf %259, %272 : vector<16x128xf32>
    %c2_i32_164 = arith.constant 2 : i32
    %274 = tpu.dynamic_rotate %272 by %c2_i32_164 dim 1 : vector<16x128xf32>, i32 -> vector<16x128xf32>
    %cst_165 = arith.constant 0.000000e+00 : f32
    %275 = vector.broadcast %cst_165 : f32 to vector<16x128xf32>
    %276 = arith.select %8, %274, %275 : vector<16x128xi1>, vector<16x128xf32>
    %277 = arith.addf %263, %276 : vector<16x128xf32>
    %c126_i32_166 = arith.constant 126 : i32
    %278 = tpu.dynamic_rotate %272 by %c126_i32_166 dim 1 : vector<16x128xf32>, i32 -> vector<16x128xf32>
    %cst_167 = arith.constant 0.000000e+00 : f32
    %279 = vector.broadcast %cst_167 : f32 to vector<16x128xf32>
    %280 = arith.select %4, %278, %279 : vector<16x128xi1>, vector<16x128xf32>
    %281 = arith.addf %267, %280 : vector<16x128xf32>
    %c0_168 = arith.constant 0 : index
    %c0_169 = arith.constant 0 : index
    %c3_170 = arith.constant 3 : index
    %c0_171 = arith.constant 0 : index
    %c0_172 = arith.constant 0 : index
    %282 = vector.load %arg4[%c0_168, %c0_169, %c3_170, %c0_171, %c0_172] : memref<1x4x4x16x128xf32, #tpu.memory_space<vmem>>, vector<1x1x1x16x128xf32>
    %283 = vector.shape_cast %282 : vector<1x1x1x16x128xf32> to vector<16x128xf32>
    %284 = vector.shape_cast %271 : vector<16x128xf32> to vector<1x1x1x16x128xf32>
    tpu.vector_store %arg4[%c0_168, %c0_169, %c3_170, %c0_171, %c0_172], %284 {strides = array<i32>} : memref<1x4x4x16x128xf32, #tpu.memory_space<vmem>>, vector<1x1x1x16x128xf32>,
    %c0_173 = arith.constant 0 : index
    %c1_174 = arith.constant 1 : index
    %c3_175 = arith.constant 3 : index
    %c0_176 = arith.constant 0 : index
    %c0_177 = arith.constant 0 : index
    %285 = vector.load %arg4[%c0_173, %c1_174, %c3_175, %c0_176, %c0_177] : memref<1x4x4x16x128xf32, #tpu.memory_space<vmem>>, vector<1x1x1x16x128xf32>
    %286 = vector.shape_cast %285 : vector<1x1x1x16x128xf32> to vector<16x128xf32>
    %287 = vector.shape_cast %273 : vector<16x128xf32> to vector<1x1x1x16x128xf32>
    tpu.vector_store %arg4[%c0_173, %c1_174, %c3_175, %c0_176, %c0_177], %287 {strides = array<i32>} : memref<1x4x4x16x128xf32, #tpu.memory_space<vmem>>, vector<1x1x1x16x128xf32>,
    %c0_178 = arith.constant 0 : index
    %c2_179 = arith.constant 2 : index
    %c3_180 = arith.constant 3 : index
    %c0_181 = arith.constant 0 : index
    %c0_182 = arith.constant 0 : index
    %288 = vector.load %arg4[%c0_178, %c2_179, %c3_180, %c0_181, %c0_182] : memref<1x4x4x16x128xf32, #tpu.memory_space<vmem>>, vector<1x1x1x16x128xf32>
    %289 = vector.shape_cast %288 : vector<1x1x1x16x128xf32> to vector<16x128xf32>
    %290 = vector.shape_cast %277 : vector<16x128xf32> to vector<1x1x1x16x128xf32>
    tpu.vector_store %arg4[%c0_178, %c2_179, %c3_180, %c0_181, %c0_182], %290 {strides = array<i32>} : memref<1x4x4x16x128xf32, #tpu.memory_space<vmem>>, vector<1x1x1x16x128xf32>,
    %c0_183 = arith.constant 0 : index
    %c3_184 = arith.constant 3 : index
    %c3_185 = arith.constant 3 : index
    %c0_186 = arith.constant 0 : index
    %c0_187 = arith.constant 0 : index
    %291 = vector.load %arg4[%c0_183, %c3_184, %c3_185, %c0_186, %c0_187] : memref<1x4x4x16x128xf32, #tpu.memory_space<vmem>>, vector<1x1x1x16x128xf32>
    %292 = vector.shape_cast %291 : vector<1x1x1x16x128xf32> to vector<16x128xf32>
    %293 = vector.shape_cast %281 : vector<16x128xf32> to vector<1x1x1x16x128xf32>
    tpu.vector_store %arg4[%c0_183, %c3_184, %c3_185, %c0_186, %c0_187], %293 {strides = array<i32>} : memref<1x4x4x16x128xf32, #tpu.memory_space<vmem>>, vector<1x1x1x16x128xf32>,
    return
  }
  func.func @transform_0(%arg0: i32, %arg1: i32, %arg2: i32) -> (i32, i32, i32, i32) {
    %c0_i32 = arith.constant 0 : i32
    %c0_i32_0 = arith.constant 0 : i32
    return %arg0, %arg1, %arg2, %c0_i32 : i32, i32, i32, i32
  }
  func.func @transform_1(%arg0: i32, %arg1: i32, %arg2: i32) -> (i32, i32, i32, i32, i32) {
    %c0_i32 = arith.constant 0 : i32
    %c0_i32_0 = arith.constant 0 : i32
    %c0_i32_1 = arith.constant 0 : i32
    return %arg0, %c0_i32, %arg1, %arg2, %c0_i32_0 : i32, i32, i32, i32, i32
  }
}

</mosaic_0001>

<llo_original>
// kernel: tpu_custom_call.1
$region0: #{tpu_custom_call.1}
  #allocation0 [shape = 'u32[]', space=smem, size = 0x4, offset = 0x4, fixed_abs, tag = 'smem constant byte address 0x4 - core index']
  #allocation1 [shape = 'u32[144,128]{1,0:T(1,128)}', space=vmem, size = 0x12000, scoped, tag = 'internal scratch']
  %s0 = inlined_call_operand.hbm [shape: f32[2,4,16,128], index: 0, kind: input, shape index: {}]
  %s1 = inlined_call_operand.hbm [shape: f32[2,4,4,16,128], index: 1, kind: output, shape index: {}]
  %s2 = sld [smem:[#allocation0]]
  $region41: #{tpu_custom_call.1} parent=0
    _
  %s4 = ssub.s32 1, %s2
  %s5 = scalar_select 0, %s4, %s2
  $region1: #{tpu_custom_call.1} parent=0
    #allocation2 [shape = 'u8[65536]{0}', space=vmem, size = 0x10000, scoped, tag = 'input window, operand 0']
    #allocation3 [shape = 's32[2]{0}', space=sflag, size = 0x8, scoped, tag = 'scoped memory for tpu_custom_call.1']
    #allocation4 [shape = 's32[2]{0}', space=sflag, size = 0x8, scoped, tag = 'scoped memory for tpu_custom_call.1']
    #allocation5 [shape = 'u8[262144]{0}', space=vmem, size = 0x40000, scoped, tag = 'output window, operand 0']
    %6 = vsyncpa [#allocation3], 0
    %s7 = scalar_lea.sflag [#allocation3], 1
    %8 = vsyncpa %s7, 0
    %9 = vsyncpa [#allocation4], 0
    %s10 = scalar_lea.sflag [#allocation4], 1
    %11 = vsyncpa %s10, 0
    loop: start=0, step=1, limit=4
    $region2: #{tpu_custom_call.1} parent=1 // loop_pre_header
      _
    $region3: #{tpu_custom_call.1} parent=1 // loop_header
      %s13 = sphi 0, %s17
      %p14 = scmp.ge.s32.totalorder %s13, 4
      %s20 = sphi 0, %s39
      %s21 = sphi 0, %s35
      %s22 = sphi 0, %s31
      %s23 = sphi 0, %s20
      %s24 = sphi 0, %s21
      %s25 = sphi 0, %s22
      %s26 = sphi 0, %s23
      %s27 = sphi 0, %s24
      %s28 = sphi 0, %s25
      %s46 = sphi 0, %s48
      %s49 = sphi 0, %s46
      %s50 = sphi 0, %s49
      %s66 = sphi 0, %s50
      %s76 = sphi 0, %s78
      %s79 = sphi 0, %s76
      %s80 = sphi 0, %s79
      %s96 = sphi 0, %s80
    $region4: #{tpu_custom_call.1} parent=1 // loop_header_branch
      %16 = sbr.rel (%p14) target = $region8
    $region5: #{tpu_custom_call.1} parent=1 // loop_body
      %s18 = ssub.s32 %s13, 1
      %s19 = ssub.s32 %s13, 2
      %s29 = sadd.s32 1, %s22
      %p30 = scmp.ge.s32.totalorder %s29, 1
      %s31 = scalar_select %p30, 0, %s29
      %s32 = sadd.s32 1, %s21
      %s33 = scalar_select %p30, %s32, %s21
      %p34 = scmp.ge.s32.totalorder %s33, 1
      %s35 = scalar_select %p34, 0, %s33
      %s36 = sadd.s32 1, %s20
      %s37 = scalar_select %p34, %s36, %s20
      %p38 = scmp.ge.s32.totalorder %s37, 2
      %s39 = scalar_select %p38, 0, %s37
      %s40 = ssub.s32 %s20, %s39
      %s41 = ssub.s32 %s21, %s35
      %s42 = sor.u32 %s40, %s41
      %s43 = ssub.s32 %s22, %s31
      %s44 = sor.u32 %s42, %s43
      %p45 = scmp.eq.s32.totalorder %s44, 0
      %s47 = sadd.s32 %s46, 1
      %s48 = scalar_select %p45, %s46, %s47
      %p51 = pneg %p45
      %p52 = scmp.eq.s32.totalorder %s13, 1
      %p53 = por %p51, %p52
      %p54 = scmp.ne.s32.totalorder %s46, %s49
      %p55 = scmp.eq.s32.totalorder %s13, 0
      %p56 = por %p54, %p55
      %p57 = scmp.ne.s32.totalorder %s46, %s49
      %p58 = scmp.eq.s32.totalorder %s18, 1
      %p59 = por %p57, %p58
      %p60 = scmp.ne.s32.totalorder %s49, %s50
      %p61 = scmp.eq.s32.totalorder %s18, 0
      %p62 = por %p60, %p61
      %p63 = scmp.ne.s32.totalorder %s49, %s50
      %p64 = scmp.eq.s32.totalorder %s19, 1
      %p65 = por %p63, %p64
      %p67 = scmp.ne.s32.totalorder %s50, %s66
      %p68 = scmp.eq.s32.totalorder %s19, 0
      %p69 = por %p67, %p68
      %s70 = ssub.s32 %s20, %s39
      %s71 = ssub.s32 %s21, %s35
      %s72 = sor.u32 %s70, %s71
      %s73 = ssub.s32 %s22, %s31
      %s74 = sor.u32 %s72, %s73
      %p75 = scmp.eq.s32.totalorder %s74, 0
      %s77 = sadd.s32 %s76, 1
      %s78 = scalar_select %p75, %s76, %s77
      %p81 = pneg %p75
      %p82 = scmp.eq.s32.totalorder %s13, 1
      %p83 = por %p81, %p82
      %p84 = scmp.ne.s32.totalorder %s76, %s79
      %p85 = scmp.eq.s32.totalorder %s13, 0
      %p86 = por %p84, %p85
      %p87 = scmp.ne.s32.totalorder %s76, %s79
      %p88 = scmp.eq.s32.totalorder %s18, 1
      %p89 = por %p87, %p88
      %p90 = scmp.ne.s32.totalorder %s79, %s80
      %p91 = scmp.eq.s32.totalorder %s18, 0
      %p92 = por %p90, %p91
      %p93 = scmp.ne.s32.totalorder %s79, %s80
      %p94 = scmp.eq.s32.totalorder %s19, 1
      %p95 = por %p93, %p94
      %p97 = scmp.ne.s32.totalorder %s80, %s96
      %p98 = scmp.eq.s32.totalorder %s19, 0
      %p99 = por %p97, %p98
      %p100 = scmp.le.s32.totalorder 1, %s13
      %p101 = scmp.lt.s32.totalorder %s13, 3
      %p102 = pnand %p100, %p101
      %p103 = pneg %p102
      // Predicated region
      $region9: #{tpu_custom_call.1} parent=5 // pred_check
        _
      $region10: #{tpu_custom_call.1} parent=5 // pred_check_branch
        %105 = sbr.rel (%p102) target = $region12
      $region11: #{tpu_custom_call.1} parent=5 // pred_region
        %s106 = ssub.s32 %s13, 1
      $region12: #{tpu_custom_call.1} parent=5 // pred_fallthru
        _
      %p107 = scmp.lt.s32.totalorder %s13, 2
      // Predicated region
      $region13: #{tpu_custom_call.1} parent=5 // pred_check
        %p108 = pneg %p107
      $region14: #{tpu_custom_call.1} parent=5 // pred_check_branch
        %110 = sbr.rel (%p108) target = $region16
      $region15: #{tpu_custom_call.1} parent=5 // pred_region
        // Predicated region
        $region17: #{tpu_custom_call.1} parent=15 // pred_check
          %p111 = pneg %p56
        $region18: #{tpu_custom_call.1} parent=15 // pred_check_branch
          %113 = sbr.rel (%p111) target = $region20
        $region19: #{tpu_custom_call.1} parent=15 // pred_region
          %s114 = sand.u32 %s46, 1
          %s115 = scalar_lea.sflag [#allocation3], %s114
          %s116 = sand.u32 %s46, 1
          %s117 = smul.addr %s116, 64
          %s118 = scalar_lea.vmem [#allocation2], %s117
          %s119 = smul.u32 4, %s21
          %s120 = smul.u32 2, %s22
          %s122 = ssub.s32 1024, 1024
          %123 = vsyncadd %s115, %s122
          %s124 = smul.addr %s119, 2
          %s125 = sadd.s32 %s120, %s124
          %s126 = smul.addr %s20, 8
          %s127 = sadd.s32 %s125, %s126
          %s128 = smul.addr %s127, 128
          %s129 = scalar_lea.hbm %s0, %s128
          %s130 = sshll.u32 %s118, 4
          %s131 = int_to_ptr.vmem [resolvable:$true] %s130
          %136 = dma.hbm_to_vmem [thread:$0]  %s129, 1024, %s131, %s115, 128, 128, 8
        $region20: #{tpu_custom_call.1} parent=15 // pred_fallthru
          _
      $region16: #{tpu_custom_call.1} parent=5 // pred_fallthru
        _
      %p137 = scmp.le.s32.totalorder 1, %s13
      %p138 = scmp.lt.s32.totalorder %s13, 3
      %p139 = pnand %p137, %p138
      %p140 = pneg %p139
      // Predicated region
      $region21: #{tpu_custom_call.1} parent=5 // pred_check
        _
      $region22: #{tpu_custom_call.1} parent=5 // pred_check_branch
        %142 = sbr.rel (%p139) target = $region24
      $region23: #{tpu_custom_call.1} parent=5 // pred_region
        %s143 = ssub.s32 %s13, 1
        %s144 = sand.u32 %s49, 1
        %s145 = scalar_lea.sflag [#allocation3], %s144
        %s146 = sand.u32 %s49, 1
        %s147 = smul.addr %s146, 64
        %s148 = scalar_lea.vmem [#allocation2], %s147
        // Predicated region
        $region25: #{tpu_custom_call.1} parent=23 // pred_check
          %p149 = pneg %p62
        $region26: #{tpu_custom_call.1} parent=23 // pred_check_branch
          %151 = sbr.rel (%p149) target = $region28
        $region27: #{tpu_custom_call.1} parent=23 // pred_region
          %152 = dma.done %s145, 1024
        $region28: #{tpu_custom_call.1} parent=23 // pred_fallthru
          _
        %s153 = sand.u32 %s49, 1
        %s154 = scalar_lea.sflag [#allocation3], %s153
        %s155 = sand.u32 %s49, 1
        %s156 = smul.addr %s155, 64
        %s157 = scalar_lea.vmem [#allocation2], %s156
        %p158 = pneg %p62
        %p159 = pneg %p59
        %p160 = pneg %p92
        %p161 = pneg %p89
        %s162 = sand.u32 %s79, 1
        %s163 = scalar_lea.sflag [#allocation4], %s162
        %s164 = sand.u32 %s79, 1
        %s165 = smul.addr %s164, 256
        %s166 = scalar_lea.vmem [#allocation5], %s165
        %s167 = smul.u32 4, %s24
        %s168 = smul.u32 2, %s25
        %s169 = smul.u32 4, %s24
        %s170 = smul.u32 2, %s25
        %v171 = vlaneseq
        %v172 = vand.u32 %v171, 127
        %vm173 = vcmp.lt.s32.totalorder %v172, 127
        %vm174 = vcmp.lt.s32.totalorder %v172, 126
        %vm175 = vcmp.ge.s32.totalorder %v172, 1
        %vm176 = vcmp.ge.s32.totalorder %v172, 2
        %v177 = vld [vmem:[%s148] sm:$0xff]
        %v178 = vld [vmem:[%s148 + $0x8] sm:$0xff]
        %179 = vrot.lane.b32.xlu0 %v177, 127
        %v180 = vpop.permute.xlu0 %179
        %181 = vrot.lane.b32.xlu0 %v178, 127
        %v182 = vpop.permute.xlu0 %181
        %v183 = vsel %vm173, %v180, 0.0
        %v184 = vsel %vm173, %v182, 0.0
        %v185 = vadd.f32 %v177, %v183
        %v186 = vadd.f32 %v178, %v184
        %vm190 = vcmask 1046528
        %v191 = vrot.slane %v177, 1
        %v192 = vrot.slane %v178, 1
        %v193 = vsel %vm190, %v191, %v192
        %v194 = vrot.slane 0.0, 1
        %v195 = vsel %vm190, %v192, %v194
        %v198 = vadd.f32 %v177, %v193
        %v199 = vadd.f32 %v178, %v195
        %200 = vrot.lane.b32.xlu0 %v193, 127
        %v201 = vpop.permute.xlu0 %200
        %202 = vrot.lane.b32.xlu0 %v195, 127
        %v203 = vpop.permute.xlu0 %202
        %v204 = vsel %vm173, %v201, 0.0
        %v205 = vsel %vm173, %v203, 0.0
        %v206 = vadd.f32 %v177, %v204
        %v207 = vadd.f32 %v178, %v205
        %208 = vrot.lane.b32.xlu0 %v193, 1
        %v209 = vpop.permute.xlu0 %208
        %210 = vrot.lane.b32.xlu0 %v195, 1
        %v211 = vpop.permute.xlu0 %210
        %v212 = vsel %vm175, %v209, 0.0
        %v213 = vsel %vm175, %v211, 0.0
        %v214 = vadd.f32 %v177, %v212
        %v215 = vadd.f32 %v178, %v213
        %216 = vrot.lane.b32.xlu0 %v177, 1
        %v217 = vpop.permute.xlu0 %216
        %218 = vrot.lane.b32.xlu0 %v178, 1
        %v219 = vpop.permute.xlu0 %218
        %v220 = vsel %vm175, %v217, 0.0
        %v221 = vsel %vm175, %v219, 0.0
        %v222 = vadd.f32 %v185, %v220
        %v223 = vadd.f32 %v186, %v221
        %vm224 = vcmask 1040384
        %v225 = vrot.slane 0.0, 7
        %v226 = vrot.slane %v177, 7
        %v227 = vsel %vm224, %v225, %v226
        %v228 = vrot.slane %v178, 7
        %v229 = vsel %vm224, %v226, %v228
        %v232 = vadd.f32 %v198, %v227
        %v233 = vadd.f32 %v199, %v229
        %234 = vrot.lane.b32.xlu0 %v227, 1
        %v235 = vpop.permute.xlu0 %234
        %236 = vrot.lane.b32.xlu0 %v229, 1
        %v237 = vpop.permute.xlu0 %236
        %v238 = vsel %vm175, %v235, 0.0
        %v239 = vsel %vm175, %v237, 0.0
        %v240 = vadd.f32 %v206, %v238
        %v241 = vadd.f32 %v207, %v239
        %242 = vrot.lane.b32.xlu0 %v227, 127
        %v243 = vpop.permute.xlu0 %242
        %244 = vrot.lane.b32.xlu0 %v229, 127
        %v245 = vpop.permute.xlu0 %244
        %v246 = vsel %vm173, %v243, 0.0
        %v247 = vsel %vm173, %v245, 0.0
        %v248 = vadd.f32 %v214, %v246
        %v249 = vadd.f32 %v215, %v247
        %250 = vrot.lane.b32.xlu0 %v177, 126
        %v251 = vpop.permute.xlu0 %250
        %252 = vrot.lane.b32.xlu0 %v178, 126
        %v253 = vpop.permute.xlu0 %252
        %v254 = vsel %vm174, %v251, 0.0
        %v255 = vsel %vm174, %v253, 0.0
        %v256 = vadd.f32 %v222, %v254
        %v257 = vadd.f32 %v223, %v255
        %vm258 = vcmask 1045504
        %v259 = vrot.slane %v177, 2
        %v260 = vrot.slane %v178, 2
        %v261 = vsel %vm258, %v259, %v260
        %v262 = vrot.slane 0.0, 2
        %v263 = vsel %vm258, %v260, %v262
        %v266 = vadd.f32 %v232, %v261
        %v267 = vadd.f32 %v233, %v263
        %268 = vrot.lane.b32.xlu0 %v261, 126
        %v269 = vpop.permute.xlu0 %268
        %270 = vrot.lane.b32.xlu0 %v263, 126
        %v271 = vpop.permute.xlu0 %270
        %v272 = vsel %vm174, %v269, 0.0
        %v273 = vsel %vm174, %v271, 0.0
        %v274 = vadd.f32 %v240, %v272
        %v275 = vadd.f32 %v241, %v273
        %276 = vrot.lane.b32.xlu0 %v261, 2
        %v277 = vpop.permute.xlu0 %276
        %278 = vrot.lane.b32.xlu0 %v263, 2
        %v279 = vpop.permute.xlu0 %278
        %v280 = vsel %vm176, %v277, 0.0
        %v281 = vsel %vm176, %v279, 0.0
        %v282 = vadd.f32 %v248, %v280
        %v283 = vadd.f32 %v249, %v281
        %284 = vrot.lane.b32.xlu0 %v177, 2
        %v285 = vpop.permute.xlu0 %284
        %286 = vrot.lane.b32.xlu0 %v178, 2
        %v287 = vpop.permute.xlu0 %286
        %v288 = vsel %vm176, %v285, 0.0
        %v289 = vsel %vm176, %v287, 0.0
        %v290 = vadd.f32 %v256, %v288
        %v291 = vadd.f32 %v257, %v289
        %vm292 = vcmask 1041408
        %v293 = vrot.slane 0.0, 6
        %v294 = vrot.slane %v177, 6
        %v295 = vsel %vm292, %v293, %v294
        %v296 = vrot.slane %v178, 6
        %v297 = vsel %vm292, %v294, %v296
        %v300 = vadd.f32 %v266, %v295
        %v301 = vadd.f32 %v267, %v297
        %302 = vrot.lane.b32.xlu0 %v295, 2
        %v303 = vpop.permute.xlu0 %302
        %304 = vrot.lane.b32.xlu0 %v297, 2
        %v305 = vpop.permute.xlu0 %304
        %v306 = vsel %vm176, %v303, 0.0
        %v307 = vsel %vm176, %v305, 0.0
        %v308 = vadd.f32 %v274, %v306
        %v309 = vadd.f32 %v275, %v307
        %310 = vrot.lane.b32.xlu0 %v295, 126
        %v311 = vpop.permute.xlu0 %310
        %312 = vrot.lane.b32.xlu0 %v297, 126
        %v313 = vpop.permute.xlu0 %312
        %v314 = vsel %vm174, %v311, 0.0
        %v315 = vsel %vm174, %v313, 0.0
        %v316 = vadd.f32 %v282, %v314
        %v317 = vadd.f32 %v283, %v315
        %318 = vst [vmem:[%s166] sm:$0xff] %v290
        %319 = vst [vmem:[%s166 + $0x8] sm:$0xff] %v291
        %s320 = scalar_lea.vmem %s166, 64 [#allocation5]
        %321 = vst [vmem:[%s320] sm:$0xff] %v300
        %322 = vst [vmem:[%s320 + $0x8] sm:$0xff] %v301
        %s323 = scalar_lea.vmem %s166, 128 [#allocation5]
        %324 = vst [vmem:[%s323] sm:$0xff] %v308
        %325 = vst [vmem:[%s323 + $0x8] sm:$0xff] %v309
        %s326 = scalar_lea.vmem %s166, 192 [#allocation5]
        %327 = vst [vmem:[%s326] sm:$0xff] %v316
        %328 = vst [vmem:[%s326 + $0x8] sm:$0xff] %v317
        %s329 = scalar_lea.vmem %s148, 16 [#allocation2]
        %v330 = vld [vmem:[%s329] sm:$0xff]
        %v331 = vld [vmem:[%s329 + $0x8] sm:$0xff]
        %332 = vrot.lane.b32.xlu0 %v330, 127
        %v333 = vpop.permute.xlu0 %332
        %334 = vrot.lane.b32.xlu0 %v331, 127
        %v335 = vpop.permute.xlu0 %334
        %v336 = vsel %vm173, %v333, 0.0
        %v337 = vsel %vm173, %v335, 0.0
        %v338 = vadd.f32 %v330, %v336
        %v339 = vadd.f32 %v331, %v337
        %v342 = vrot.slane %v330, 1
        %v343 = vrot.slane %v331, 1
        %v344 = vsel %vm190, %v342, %v343
        %v345 = vsel %vm190, %v343, %v194
        %v348 = vadd.f32 %v330, %v344
        %v349 = vadd.f32 %v331, %v345
        %350 = vrot.lane.b32.xlu0 %v344, 127
        %v351 = vpop.permute.xlu0 %350
        %352 = vrot.lane.b32.xlu0 %v345, 127
        %v353 = vpop.permute.xlu0 %352
        %v354 = vsel %vm173, %v351, 0.0
        %v355 = vsel %vm173, %v353, 0.0
        %v356 = vadd.f32 %v330, %v354
        %v357 = vadd.f32 %v331, %v355
        %358 = vrot.lane.b32.xlu0 %v344, 1
        %v359 = vpop.permute.xlu0 %358
        %360 = vrot.lane.b32.xlu0 %v345, 1
        %v361 = vpop.permute.xlu0 %360
        %v362 = vsel %vm175, %v359, 0.0
        %v363 = vsel %vm175, %v361, 0.0
        %v364 = vadd.f32 %v330, %v362
        %v365 = vadd.f32 %v331, %v363
        %366 = vrot.lane.b32.xlu0 %v330, 1
        %v367 = vpop.permute.xlu0 %366
        %368 = vrot.lane.b32.xlu0 %v331, 1
        %v369 = vpop.permute.xlu0 %368
        %v370 = vsel %vm175, %v367, 0.0
        %v371 = vsel %vm175, %v369, 0.0
        %v372 = vadd.f32 %v338, %v370
        %v373 = vadd.f32 %v339, %v371
        %v374 = vrot.slane %v330, 7
        %v375 = vsel %vm224, %v225, %v374
        %v376 = vrot.slane %v331, 7
        %v377 = vsel %vm224, %v374, %v376
        %v380 = vadd.f32 %v348, %v375
        %v381 = vadd.f32 %v349, %v377
        %382 = vrot.lane.b32.xlu0 %v375, 1
        %v383 = vpop.permute.xlu0 %382
        %384 = vrot.lane.b32.xlu0 %v377, 1
        %v385 = vpop.permute.xlu0 %384
        %v386 = vsel %vm175, %v383, 0.0
        %v387 = vsel %vm175, %v385, 0.0
        %v388 = vadd.f32 %v356, %v386
        %v389 = vadd.f32 %v357, %v387
        %390 = vrot.lane.b32.xlu0 %v375, 127
        %v391 = vpop.permute.xlu0 %390
        %392 = vrot.lane.b32.xlu0 %v377, 127
        %v393 = vpop.permute.xlu0 %392
        %v394 = vsel %vm173, %v391, 0.0
        %v395 = vsel %vm173, %v393, 0.0
        %v396 = vadd.f32 %v364, %v394
        %v397 = vadd.f32 %v365, %v395
        %398 = vrot.lane.b32.xlu0 %v330, 126
        %v399 = vpop.permute.xlu0 %398
        %400 = vrot.lane.b32.xlu0 %v331, 126
        %v401 = vpop.permute.xlu0 %400
        %v402 = vsel %vm174, %v399, 0.0
        %v403 = vsel %vm174, %v401, 0.0
        %v404 = vadd.f32 %v372, %v402
        %v405 = vadd.f32 %v373, %v403
        %v406 = vrot.slane %v330, 2
        %v407 = vrot.slane %v331, 2
        %v408 = vsel %vm258, %v406, %v407
        %v409 = vsel %vm258, %v407, %v262
        %v412 = vadd.f32 %v380, %v408
        %v413 = vadd.f32 %v381, %v409
        %414 = vrot.lane.b32.xlu0 %v408, 126
        %v415 = vpop.permute.xlu0 %414
        %416 = vrot.lane.b32.xlu0 %v409, 126
        %v417 = vpop.permute.xlu0 %416
        %v418 = vsel %vm174, %v415, 0.0
        %v419 = vsel %vm174, %v417, 0.0
        %v420 = vadd.f32 %v388, %v418
        %v421 = vadd.f32 %v389, %v419
        %422 = vrot.lane.b32.xlu0 %v408, 2
        %v423 = vpop.permute.xlu0 %422
        %424 = vrot.lane.b32.xlu0 %v409, 2
        %v425 = vpop.permute.xlu0 %424
        %v426 = vsel %vm176, %v423, 0.0
        %v427 = vsel %vm176, %v425, 0.0
        %v428 = vadd.f32 %v396, %v426
        %v429 = vadd.f32 %v397, %v427
        %430 = vrot.lane.b32.xlu0 %v330, 2
        %v431 = vpop.permute.xlu0 %430
        %432 = vrot.lane.b32.xlu0 %v331, 2
        %v433 = vpop.permute.xlu0 %432
        %v434 = vsel %vm176, %v431, 0.0
        %v435 = vsel %vm176, %v433, 0.0
        %v436 = vadd.f32 %v404, %v434
        %v437 = vadd.f32 %v405, %v435
        %v438 = vrot.slane %v330, 6
        %v439 = vsel %vm292, %v293, %v438
        %v440 = vrot.slane %v331, 6
        %v441 = vsel %vm292, %v438, %v440
        %v444 = vadd.f32 %v412, %v439
        %v445 = vadd.f32 %v413, %v441
        %446 = vrot.lane.b32.xlu0 %v439, 2
        %v447 = vpop.permute.xlu0 %446
        %448 = vrot.lane.b32.xlu0 %v441, 2
        %v449 = vpop.permute.xlu0 %448
        %v450 = vsel %vm176, %v447, 0.0
        %v451 = vsel %vm176, %v449, 0.0
        %v452 = vadd.f32 %v420, %v450
        %v453 = vadd.f32 %v421, %v451
        %454 = vrot.lane.b32.xlu0 %v439, 126
        %v455 = vpop.permute.xlu0 %454
        %456 = vrot.lane.b32.xlu0 %v441, 126
        %v457 = vpop.permute.xlu0 %456
        %v458 = vsel %vm174, %v455, 0.0
        %v459 = vsel %vm174, %v457, 0.0
        %v460 = vadd.f32 %v428, %v458
        %v461 = vadd.f32 %v429, %v459
        %s462 = scalar_lea.vmem %s166, 16 [#allocation5]
        %463 = vst [vmem:[%s462] sm:$0xff] %v436
        %464 = vst [vmem:[%s462 + $0x8] sm:$0xff] %v437
        %s465 = scalar_lea.vmem %s166, 80 [#allocation5]
        %466 = vst [vmem:[%s465] sm:$0xff] %v444
        %467 = vst [vmem:[%s465 + $0x8] sm:$0xff] %v445
        %s468 = scalar_lea.vmem %s166, 144 [#allocation5]
        %469 = vst [vmem:[%s468] sm:$0xff] %v452
        %470 = vst [vmem:[%s468 + $0x8] sm:$0xff] %v453
        %s471 = scalar_lea.vmem %s166, 208 [#allocation5]
        %472 = vst [vmem:[%s471] sm:$0xff] %v460
        %473 = vst [vmem:[%s471 + $0x8] sm:$0xff] %v461
        %s474 = scalar_lea.vmem %s148, 32 [#allocation2]
        %v475 = vld [vmem:[%s474] sm:$0xff]
        %v476 = vld [vmem:[%s474 + $0x8] sm:$0xff]
        %477 = vrot.lane.b32.xlu0 %v475, 127
        %v478 = vpop.permute.xlu0 %477
        %479 = vrot.lane.b32.xlu0 %v476, 127
        %v480 = vpop.permute.xlu0 %479
        %v481 = vsel %vm173, %v478, 0.0
        %v482 = vsel %vm173, %v480, 0.0
        %v483 = vadd.f32 %v475, %v481
        %v484 = vadd.f32 %v476, %v482
        %v487 = vrot.slane %v475, 1
        %v488 = vrot.slane %v476, 1
        %v489 = vsel %vm190, %v487, %v488
        %v490 = vsel %vm190, %v488, %v194
        %v493 = vadd.f32 %v475, %v489
        %v494 = vadd.f32 %v476, %v490
        %495 = vrot.lane.b32.xlu0 %v489, 127
        %v496 = vpop.permute.xlu0 %495
        %497 = vrot.lane.b32.xlu0 %v490, 127
        %v498 = vpop.permute.xlu0 %497
        %v499 = vsel %vm173, %v496, 0.0
        %v500 = vsel %vm173, %v498, 0.0
        %v501 = vadd.f32 %v475, %v499
        %v502 = vadd.f32 %v476, %v500
        %503 = vrot.lane.b32.xlu0 %v489, 1
        %v504 = vpop.permute.xlu0 %503
        %505 = vrot.lane.b32.xlu0 %v490, 1
        %v506 = vpop.permute.xlu0 %505
        %v507 = vsel %vm175, %v504, 0.0
        %v508 = vsel %vm175, %v506, 0.0
        %v509 = vadd.f32 %v475, %v507
        %v510 = vadd.f32 %v476, %v508
        %511 = vrot.lane.b32.xlu0 %v475, 1
        %v512 = vpop.permute.xlu0 %511
        %513 = vrot.lane.b32.xlu0 %v476, 1
        %v514 = vpop.permute.xlu0 %513
        %v515 = vsel %vm175, %v512, 0.0
        %v516 = vsel %vm175, %v514, 0.0
        %v517 = vadd.f32 %v483, %v515
        %v518 = vadd.f32 %v484, %v516
        %v519 = vrot.slane %v475, 7
        %v520 = vsel %vm224, %v225, %v519
        %v521 = vrot.slane %v476, 7
        %v522 = vsel %vm224, %v519, %v521
        %v525 = vadd.f32 %v493, %v520
        %v526 = vadd.f32 %v494, %v522
        %527 = vrot.lane.b32.xlu0 %v520, 1
        %v528 = vpop.permute.xlu0 %527
        %529 = vrot.lane.b32.xlu0 %v522, 1
        %v530 = vpop.permute.xlu0 %529
        %v531 = vsel %vm175, %v528, 0.0
        %v532 = vsel %vm175, %v530, 0.0
        %v533 = vadd.f32 %v501, %v531
        %v534 = vadd.f32 %v502, %v532
        %535 = vrot.lane.b32.xlu0 %v520, 127
        %v536 = vpop.permute.xlu0 %535
        %537 = vrot.lane.b32.xlu0 %v522, 127
        %v538 = vpop.permute.xlu0 %537
        %v539 = vsel %vm173, %v536, 0.0
        %v540 = vsel %vm173, %v538, 0.0
        %v541 = vadd.f32 %v509, %v539
        %v542 = vadd.f32 %v510, %v540
        %543 = vrot.lane.b32.xlu0 %v475, 126
        %v544 = vpop.permute.xlu0 %543
        %545 = vrot.lane.b32.xlu0 %v476, 126
        %v546 = vpop.permute.xlu0 %545
        %v547 = vsel %vm174, %v544, 0.0
        %v548 = vsel %vm174, %v546, 0.0
        %v549 = vadd.f32 %v517, %v547
        %v550 = vadd.f32 %v518, %v548
        %v551 = vrot.slane %v475, 2
        %v552 = vrot.slane %v476, 2
        %v553 = vsel %vm258, %v551, %v552
        %v554 = vsel %vm258, %v552, %v262
        %v557 = vadd.f32 %v525, %v553
        %v558 = vadd.f32 %v526, %v554
        %559 = vrot.lane.b32.xlu0 %v553, 126
        %v560 = vpop.permute.xlu0 %559
        %561 = vrot.lane.b32.xlu0 %v554, 126
        %v562 = vpop.permute.xlu0 %561
        %v563 = vsel %vm174, %v560, 0.0
        %v564 = vsel %vm174, %v562, 0.0
        %v565 = vadd.f32 %v533, %v563
        %v566 = vadd.f32 %v534, %v564
        %567 = vrot.lane.b32.xlu0 %v553, 2
        %v568 = vpop.permute.xlu0 %567
        %569 = vrot.lane.b32.xlu0 %v554, 2
        %v570 = vpop.permute.xlu0 %569
        %v571 = vsel %vm176, %v568, 0.0
        %v572 = vsel %vm176, %v570, 0.0
        %v573 = vadd.f32 %v541, %v571
        %v574 = vadd.f32 %v542, %v572
        %575 = vrot.lane.b32.xlu0 %v475, 2
        %v576 = vpop.permute.xlu0 %575
        %577 = vrot.lane.b32.xlu0 %v476, 2
        %v578 = vpop.permute.xlu0 %577
        %v579 = vsel %vm176, %v576, 0.0
        %v580 = vsel %vm176, %v578, 0.0
        %v581 = vadd.f32 %v549, %v579
        %v582 = vadd.f32 %v550, %v580
        %v583 = vrot.slane %v475, 6
        %v584 = vsel %vm292, %v293, %v583
        %v585 = vrot.slane %v476, 6
        %v586 = vsel %vm292, %v583, %v585
        %v589 = vadd.f32 %v557, %v584
        %v590 = vadd.f32 %v558, %v586
        %591 = vrot.lane.b32.xlu0 %v584, 2
        %v592 = vpop.permute.xlu0 %591
        %593 = vrot.lane.b32.xlu0 %v586, 2
        %v594 = vpop.permute.xlu0 %593
        %v595 = vsel %vm176, %v592, 0.0
        %v596 = vsel %vm176, %v594, 0.0
        %v597 = vadd.f32 %v565, %v595
        %v598 = vadd.f32 %v566, %v596
        %599 = vrot.lane.b32.xlu0 %v584, 126
        %v600 = vpop.permute.xlu0 %599
        %601 = vrot.lane.b32.xlu0 %v586, 126
        %v602 = vpop.permute.xlu0 %601
        %v603 = vsel %vm174, %v600, 0.0
        %v604 = vsel %vm174, %v602, 0.0
        %v605 = vadd.f32 %v573, %v603
        %v606 = vadd.f32 %v574, %v604
        %s607 = scalar_lea.vmem %s166, 32 [#allocation5]
        %608 = vst [vmem:[%s607] sm:$0xff] %v581
        %609 = vst [vmem:[%s607 + $0x8] sm:$0xff] %v582
        %s610 = scalar_lea.vmem %s166, 96 [#allocation5]
        %611 = vst [vmem:[%s610] sm:$0xff] %v589
        %612 = vst [vmem:[%s610 + $0x8] sm:$0xff] %v590
        %s613 = scalar_lea.vmem %s166, 160 [#allocation5]
        %614 = vst [vmem:[%s613] sm:$0xff] %v597
        %615 = vst [vmem:[%s613 + $0x8] sm:$0xff] %v598
        %s616 = scalar_lea.vmem %s166, 224 [#allocation5]
        %617 = vst [vmem:[%s616] sm:$0xff] %v605
        %618 = vst [vmem:[%s616 + $0x8] sm:$0xff] %v606
        %s619 = scalar_lea.vmem %s148, 48 [#allocation2]
        %v620 = vld [vmem:[%s619] sm:$0xff]
        %v621 = vld [vmem:[%s619 + $0x8] sm:$0xff]
        %622 = vrot.lane.b32.xlu0 %v620, 127
        %v623 = vpop.permute.xlu0 %622
        %624 = vrot.lane.b32.xlu0 %v621, 127
        %v625 = vpop.permute.xlu0 %624
        %v626 = vsel %vm173, %v623, 0.0
        %v627 = vsel %vm173, %v625, 0.0
        %v628 = vadd.f32 %v620, %v626
        %v629 = vadd.f32 %v621, %v627
        %v632 = vrot.slane %v620, 1
        %v633 = vrot.slane %v621, 1
        %v634 = vsel %vm190, %v632, %v633
        %v635 = vsel %vm190, %v633, %v194
        %v638 = vadd.f32 %v620, %v634
        %v639 = vadd.f32 %v621, %v635
        %640 = vrot.lane.b32.xlu0 %v634, 127
        %v641 = vpop.permute.xlu0 %640
        %642 = vrot.lane.b32.xlu0 %v635, 127
        %v643 = vpop.permute.xlu0 %642
        %v644 = vsel %vm173, %v641, 0.0
        %v645 = vsel %vm173, %v643, 0.0
        %v646 = vadd.f32 %v620, %v644
        %v647 = vadd.f32 %v621, %v645
        %648 = vrot.lane.b32.xlu0 %v634, 1
        %v649 = vpop.permute.xlu0 %648
        %650 = vrot.lane.b32.xlu0 %v635, 1
        %v651 = vpop.permute.xlu0 %650
        %v652 = vsel %vm175, %v649, 0.0
        %v653 = vsel %vm175, %v651, 0.0
        %v654 = vadd.f32 %v620, %v652
        %v655 = vadd.f32 %v621, %v653
        %656 = vrot.lane.b32.xlu0 %v620, 1
        %v657 = vpop.permute.xlu0 %656
        %658 = vrot.lane.b32.xlu0 %v621, 1
        %v659 = vpop.permute.xlu0 %658
        %v660 = vsel %vm175, %v657, 0.0
        %v661 = vsel %vm175, %v659, 0.0
        %v662 = vadd.f32 %v628, %v660
        %v663 = vadd.f32 %v629, %v661
        %v664 = vrot.slane %v620, 7
        %v665 = vsel %vm224, %v225, %v664
        %v666 = vrot.slane %v621, 7
        %v667 = vsel %vm224, %v664, %v666
        %v670 = vadd.f32 %v638, %v665
        %v671 = vadd.f32 %v639, %v667
        %672 = vrot.lane.b32.xlu0 %v665, 1
        %v673 = vpop.permute.xlu0 %672
        %674 = vrot.lane.b32.xlu0 %v667, 1
        %v675 = vpop.permute.xlu0 %674
        %v676 = vsel %vm175, %v673, 0.0
        %v677 = vsel %vm175, %v675, 0.0
        %v678 = vadd.f32 %v646, %v676
        %v679 = vadd.f32 %v647, %v677
        %680 = vrot.lane.b32.xlu0 %v665, 127
        %v681 = vpop.permute.xlu0 %680
        %682 = vrot.lane.b32.xlu0 %v667, 127
        %v683 = vpop.permute.xlu0 %682
        %v684 = vsel %vm173, %v681, 0.0
        %v685 = vsel %vm173, %v683, 0.0
        %v686 = vadd.f32 %v654, %v684
        %v687 = vadd.f32 %v655, %v685
        %688 = vrot.lane.b32.xlu0 %v620, 126
        %v689 = vpop.permute.xlu0 %688
        %690 = vrot.lane.b32.xlu0 %v621, 126
        %v691 = vpop.permute.xlu0 %690
        %v692 = vsel %vm174, %v689, 0.0
        %v693 = vsel %vm174, %v691, 0.0
        %v694 = vadd.f32 %v662, %v692
        %v695 = vadd.f32 %v663, %v693
        %v696 = vrot.slane %v620, 2
        %v697 = vrot.slane %v621, 2
        %v698 = vsel %vm258, %v696, %v697
        %v699 = vsel %vm258, %v697, %v262
        %v702 = vadd.f32 %v670, %v698
        %v703 = vadd.f32 %v671, %v699
        %704 = vrot.lane.b32.xlu0 %v698, 126
        %v705 = vpop.permute.xlu0 %704
        %706 = vrot.lane.b32.xlu0 %v699, 126
        %v707 = vpop.permute.xlu0 %706
        %v708 = vsel %vm174, %v705, 0.0
        %v709 = vsel %vm174, %v707, 0.0
        %v710 = vadd.f32 %v678, %v708
        %v711 = vadd.f32 %v679, %v709
        %712 = vrot.lane.b32.xlu0 %v698, 2
        %v713 = vpop.permute.xlu0 %712
        %714 = vrot.lane.b32.xlu0 %v699, 2
        %v715 = vpop.permute.xlu0 %714
        %v716 = vsel %vm176, %v713, 0.0
        %v717 = vsel %vm176, %v715, 0.0
        %v718 = vadd.f32 %v686, %v716
        %v719 = vadd.f32 %v687, %v717
        %720 = vrot.lane.b32.xlu0 %v620, 2
        %v721 = vpop.permute.xlu0 %720
        %722 = vrot.lane.b32.xlu0 %v621, 2
        %v723 = vpop.permute.xlu0 %722
        %v724 = vsel %vm176, %v721, 0.0
        %v725 = vsel %vm176, %v723, 0.0
        %v726 = vadd.f32 %v694, %v724
        %v727 = vadd.f32 %v695, %v725
        %v728 = vrot.slane %v620, 6
        %v729 = vsel %vm292, %v293, %v728
        %v730 = vrot.slane %v621, 6
        %v731 = vsel %vm292, %v728, %v730
        %v734 = vadd.f32 %v702, %v729
        %v735 = vadd.f32 %v703, %v731
        %736 = vrot.lane.b32.xlu0 %v729, 2
        %v737 = vpop.permute.xlu0 %736
        %738 = vrot.lane.b32.xlu0 %v731, 2
        %v739 = vpop.permute.xlu0 %738
        %v740 = vsel %vm176, %v737, 0.0
        %v741 = vsel %vm176, %v739, 0.0
        %v742 = vadd.f32 %v710, %v740
        %v743 = vadd.f32 %v711, %v741
        %744 = vrot.lane.b32.xlu0 %v729, 126
        %v745 = vpop.permute.xlu0 %744
        %746 = vrot.lane.b32.xlu0 %v731, 126
        %v747 = vpop.permute.xlu0 %746
        %v748 = vsel %vm174, %v745, 0.0
        %v749 = vsel %vm174, %v747, 0.0
        %v750 = vadd.f32 %v718, %v748
        %v751 = vadd.f32 %v719, %v749
        %s752 = scalar_lea.vmem %s166, 48 [#allocation5]
        %753 = vst [vmem:[%s752] sm:$0xff] %v726
        %754 = vst [vmem:[%s752 + $0x8] sm:$0xff] %v727
        %s755 = scalar_lea.vmem %s166, 112 [#allocation5]
        %756 = vst [vmem:[%s755] sm:$0xff] %v734
        %757 = vst [vmem:[%s755 + $0x8] sm:$0xff] %v735
        %s758 = scalar_lea.vmem %s166, 176 [#allocation5]
        %759 = vst [vmem:[%s758] sm:$0xff] %v742
        %760 = vst [vmem:[%s758 + $0x8] sm:$0xff] %v743
        %s761 = scalar_lea.vmem %s166, 240 [#allocation5]
        %762 = vst [vmem:[%s761] sm:$0xff] %v750
        %763 = vst [vmem:[%s761 + $0x8] sm:$0xff] %v751
        %s764 = sand.u32 %s79, 1
        %s765 = scalar_lea.sflag [#allocation4], %s764
        %s766 = sand.u32 %s79, 1
        %s767 = smul.addr %s766, 256
        %s768 = scalar_lea.vmem [#allocation5], %s767
        // Predicated region
        $region29: #{tpu_custom_call.1} parent=23 // pred_check
          %p769 = pneg %p89
        $region30: #{tpu_custom_call.1} parent=23 // pred_check_branch
          %771 = sbr.rel (%p769) target = $region32
        $region31: #{tpu_custom_call.1} parent=23 // pred_region
          %s772 = smul.u32 4, %s24
          %s773 = smul.u32 2, %s25
          %s775 = ssub.s32 4096, 4096
          %776 = vsyncadd %s765, %s775
          %s777 = smul.addr %s772, 2
          %s778 = sadd.s32 %s773, %s777
          %s779 = smul.addr %s23, 32
          %s780 = sadd.s32 %s778, %s779
          %s781 = smul.addr %s780, 128
          %s782 = scalar_lea.hbm %s1, %s781
          %s783 = sshll.u32 %s768, 4
          %s784 = int_to_ptr.vmem [resolvable:$true] %s783
          %789 = dma.vmem_to_hbm [thread:$0]  %s784, 4096, %s782, %s765, 128, 128, 8
        $region32: #{tpu_custom_call.1} parent=23 // pred_fallthru
          _
      $region24: #{tpu_custom_call.1} parent=5 // pred_fallthru
        _
      %p790 = scmp.le.s32.totalorder 2, %s13
      // Predicated region
      $region33: #{tpu_custom_call.1} parent=5 // pred_check
        %p791 = pneg %p790
      $region34: #{tpu_custom_call.1} parent=5 // pred_check_branch
        %793 = sbr.rel (%p791) target = $region36
      $region35: #{tpu_custom_call.1} parent=5 // pred_region
        %s794 = ssub.s32 %s13, 2
        // Predicated region
        $region37: #{tpu_custom_call.1} parent=35 // pred_check
          %p795 = pneg %p95
        $region38: #{tpu_custom_call.1} parent=35 // pred_check_branch
          %797 = sbr.rel (%p795) target = $region40
        $region39: #{tpu_custom_call.1} parent=35 // pred_region
          %s798 = sand.u32 %s80, 1
          %s799 = scalar_lea.sflag [#allocation4], %s798
          %s800 = sand.u32 %s80, 1
          %s801 = smul.addr %s800, 256
          %s802 = scalar_lea.vmem [#allocation5], %s801
          %803 = dma.done %s799, 4096
        $region40: #{tpu_custom_call.1} parent=35 // pred_fallthru
          _
      $region36: #{tpu_custom_call.1} parent=5 // pred_fallthru
        _
    $region6: #{tpu_custom_call.1} parent=1 // loop_footer
      %s17 = sadd.s32 1, %s13
    $region7: #{tpu_custom_call.1} parent=1 // loop_footer_branch
      %12 = sbr.rel target = $region3
    $region8: #{tpu_custom_call.1} parent=1 // loop_exit
      _
    %804 = vsyncpa [#allocation3], 1
    %s805 = scalar_lea.sflag [#allocation3], 1
    %806 = vsyncpa %s805, 1
    %807 = vsyncpa [#allocation4], 1
    %s808 = scalar_lea.sflag [#allocation4], 1
    %809 = vsyncpa %s808, 1

</llo_original>
